<compile_context>
chip_gen: v6e
topology: v6e:2x2x1
jax: 0.10.0
libtpu: 0.0.40
codegen_flags: <defaults>
</compile_context>

<pallas_src>
import functools
import math

import jax
import jax.numpy as jnp
from jax.experimental import pallas as pl
from jax.experimental.pallas import tpu as pltpu


def _round_up(x, m):
    return ((x + m - 1) // m) * m


def _local_mlp_kernel(
    t_ref,        # (batch,) f32 in SMEM
    freqs_ref,    # (1, hdim) f32 — precomputed ang_freqs
    biases_ref,   # (8, dim_p) f32 — rows: [b1, bi, bo, b3, be, 0, 0, 0]
    x_ref,        # (1, tile_n, dim_p) compute dtype
    w1_ref,       # (dim_p, dim_p) compute dtype   lin1
    wi_ref,       # (dim_p, dim_p) compute dtype   lin_i
    wo_ref,       # (dim_p, dim_p) compute dtype   lin_o
    w3_ref,       # (dim_p, dim_p) compute dtype   lin3
    ws_ref,       # (hdim, dim_p) compute dtype    embed weight, sin half
    wc_ref,       # (hdim, dim_p) compute dtype    embed weight, cos half
    o_ref,        # (1, tile_n, dim_p) out dtype
    weff_ref,     # VMEM scratch (dim_p, dim_p) compute dtype — fused FiLM weight
    beff_ref,     # VMEM scratch (1, dim_p) f32   — fused FiLM bias
    *,
    neg_slope,
):
    b = pl.program_id(0)
    cdt = w1_ref.dtype

    # ---- Per-batch prologue (first node tile only): time embedding + fused FiLM.
    # Correct because the node axis is "arbitrary" (sequential, j == 0 first per batch
    # element on each core); do NOT flip it to "parallel" without removing this cache.
    @pl.when(pl.program_id(1) == 0)
    def _():
        t_val = t_ref[b]                                        # scalar read from SMEM
        phases = t_val * freqs_ref[...]                         # (1, hdim)
        emb = jnp.dot(jnp.sin(phases).astype(cdt), ws_ref[...],
                      preferred_element_type=jnp.float32)
        emb = emb + jnp.dot(jnp.cos(phases).astype(cdt), wc_ref[...],
                            preferred_element_type=jnp.float32)
        emb = emb + biases_ref[4:5]                             # + be -> (1, dim_p) f32

        # ((h @ Wi + bi) * emb) @ Wo + bo  ==  h @ Weff + beff
        wi_scaled = (wi_ref[...].astype(jnp.float32) * emb).astype(cdt)
        weff_ref[...] = jnp.dot(wi_scaled, wo_ref[...],
                                preferred_element_type=jnp.float32).astype(cdt)
        bi_scaled = (biases_ref[1:2] * emb).astype(cdt)
        beff_ref[...] = (jnp.dot(bi_scaled, wo_ref[...],
                                 preferred_element_type=jnp.float32)
                         + biases_ref[2:3])                     # + bo

    leaky = lambda v: jnp.where(v >= 0, v, neg_slope * v)

    x = x_ref[0]                                                # (tile_n, dim_p)

    # lin1 + LeakyReLU(0.1)
    h = jnp.dot(x, w1_ref[...], preferred_element_type=jnp.float32) + biases_ref[0:1]
    h = leaky(h)

    # Fused TimeLinearModulation (lin_i ∘ FiLM ∘ lin_o) + LeakyReLU(0.1)
    h = jnp.dot(h.astype(cdt), weff_ref[...],
                preferred_element_type=jnp.float32) + beff_ref[...]
    h = leaky(h)

    # residual + lin3
    z = (x.astype(jnp.float32) + h).astype(cdt)
    out = jnp.dot(z, w3_ref[...], preferred_element_type=jnp.float32) + biases_ref[3:4]
    o_ref[0] = out.astype(o_ref.dtype)


def local_mlp(t, x, params, *, hdim, tile_n=512, neg_slope=0.1,
              compute_dtype=jnp.bfloat16,
              vmem_budget_bytes=28 * 1024 * 1024):
    """t: (batch,) f32; x: (batch, nodes, dim) f32; params hold transposed weights."""
    batch, nodes, dim = x.shape
    out_dtype = x.dtype
    cdt = jnp.dtype(compute_dtype)

    # --- Lane/sublane alignment: pad the feature dim to a multiple of 128 so every load,
    # MXU tile and store is lane-dense; pad nodes to a multiple of the (8-aligned) tile.
    # Zero padding provably leaves the valid columns untouched (padded weight rows/cols
    # and bias entries are zero, and zero is a fixed point of LeakyReLU).
    dim_p = _round_up(dim, 128)
    tile_n = max(8, min(tile_n, _round_up(nodes, 8)))
    tile_n = _round_up(tile_n, 8)

    def vmem_estimate(tn):
        cs = cdt.itemsize
        os_ = jnp.dtype(out_dtype).itemsize
        x_io = 2 * tn * dim_p * cs + 2 * tn * dim_p * os_          # double-buffered x/out
        weights = 2 * (4 * dim_p * dim_p + 2 * hdim * dim_p) * cs  # double-buffered weights
        small = 2 * (8 * dim_p * 4 + 8 * 128 * 4)                  # biases + freqs tiles
        scratch = dim_p * dim_p * cs + 8 * dim_p * 4               # Weff + beff
        return x_io + weights + small + scratch

    while tile_n > 8 and vmem_estimate(tile_n) > vmem_budget_bytes:
        tile_n = max(8, _round_up(tile_n // 2, 8))

    nodes_p = _round_up(nodes, tile_n)
    est = vmem_estimate(tile_n)
    vmem_limit = int(min(max(2 * est, 32 * 1024 * 1024), 48 * 1024 * 1024))

    t = t.astype(jnp.float32)
    # Constant sinusoidal frequencies: computed once outside the kernel.
    freqs = jnp.exp(
        -jnp.arange(hdim, dtype=jnp.float32) / jnp.float32(hdim - 1)
    ).reshape(1, hdim)

    def pad_mat(w, rows, cols):
        return jnp.pad(w, ((0, rows - w.shape[0]), (0, cols - w.shape[1]))).astype(cdt)

    def pad_vec(v):
        return jnp.pad(v.astype(jnp.float32), (0, dim_p - v.shape[0]))

    w1 = pad_mat(params["w1_t"], dim_p, dim_p)
    wi = pad_mat(params["wi_t"], dim_p, dim_p)
    wo = pad_mat(params["wo_t"], dim_p, dim_p)
    w3 = pad_mat(params["w3_t"], dim_p, dim_p)
    ws = pad_mat(params["we_sin_t"], hdim, dim_p)
    wc = pad_mat(params["we_cos_t"], hdim, dim_p)

    zero_row = jnp.zeros((dim_p,), jnp.float32)
    biases = jnp.stack(
        [pad_vec(params["b1"]), pad_vec(params["bi"]), pad_vec(params["bo"]),
         pad_vec(params["b3"]), pad_vec(params["be"]),
         zero_row, zero_row, zero_row], axis=0)                   # (8, dim_p) f32

    x_p = jnp.pad(x, ((0, 0), (0, nodes_p - nodes), (0, dim_p - dim))).astype(cdt)

    const = lambda i, j: (0, 0)
    kernel = functools.partial(_local_mlp_kernel, neg_slope=neg_slope)

    out = pl.pallas_call(
        kernel,
        out_shape=jax.ShapeDtypeStruct((batch, nodes_p, dim_p), out_dtype),
        grid_spec=pltpu.PrefetchScalarGridSpec(
            num_scalar_prefetch=0,
            grid=(batch, nodes_p // tile_n),
            in_specs=[
                pl.BlockSpec(memory_space=pltpu.MemorySpace.SMEM),         # t
                pl.BlockSpec((1, hdim), const),                            # ang_freqs
                pl.BlockSpec((8, dim_p), const),                           # packed biases
                pl.BlockSpec((1, tile_n, dim_p), lambda i, j: (i, j, 0)),  # x
                pl.BlockSpec((dim_p, dim_p), const),                       # w1
                pl.BlockSpec((dim_p, dim_p), const),                       # wi
                pl.BlockSpec((dim_p, dim_p), const),                       # wo
                pl.BlockSpec((dim_p, dim_p), const),                       # w3
                pl.BlockSpec((hdim, dim_p), const),                        # we (sin half)
                pl.BlockSpec((hdim, dim_p), const),                        # we (cos half)
            ],
            out_specs=pl.BlockSpec((1, tile_n, dim_p), lambda i, j: (i, j, 0)),
            scratch_shapes=[
                pltpu.VMEM((dim_p, dim_p), cdt),      # cached Weff (per batch element)
                pltpu.VMEM((1, dim_p), jnp.float32),  # cached beff
            ],
        ),
        compiler_params=pltpu.CompilerParams(
            dimension_semantics=("parallel", "arbitrary"),
            vmem_limit_bytes=vmem_limit,
        ),
    )(t, freqs, biases, x_p, w1, wi, wo, w3, ws, wc)

    return out[:, :nodes, :dim]


def reference(t, x, params, hdim, neg_slope=0.1):
    """Pure-JAX reference matching the PyTorch LocalMLP forward (inds == 0)."""
    hp = jax.lax.Precision.HIGHEST
    dot = lambda a, b: jnp.matmul(a, b, precision=hp)
    leaky = lambda v: jnp.where(v >= 0, v, neg_slope * v)

    freqs = jnp.exp(-jnp.arange(hdim, dtype=jnp.float32) / (hdim - 1))
    phases = t[:, None] * freqs[None, :]
    emb = (dot(jnp.sin(phases), params["we_sin_t"])
           + dot(jnp.cos(phases), params["we_cos_t"]) + params["be"])   # (batch, dim)

    h = leaky(dot(x, params["w1_t"]) + params["b1"])                    # lin1 + actv1
    h = dot(h, params["wi_t"]) + params["bi"]                           # lin_i
    h = h * emb[:, None, :]                                             # time modulation
    h = leaky(dot(h, params["wo_t"]) + params["bo"])                    # lin_o + actv2
    return dot(x + h, params["w3_t"]) + params["b3"]                    # residual + lin3


def _make_params(key, dim, hdim):
    keys = jax.random.split(key, 10)

    def lin_init(kw, kb, fan_in, shape_wt):
        bound = 1.0 / math.sqrt(fan_in)
        w_t = jax.random.uniform(kw, shape_wt, jnp.float32, -bound, bound)
        b = jax.random.uniform(kb, (shape_wt[1],), jnp.float32, -bound, bound)
        return w_t, b

    w1_t, b1 = lin_init(keys[0], keys[1], dim, (dim, dim))
    wi_t, bi = lin_init(keys[2], keys[3], dim, (dim, dim))
    we_t, be = lin_init(keys[4], keys[5], 2 * hdim, (2 * hdim, dim))
    wo_t, bo = lin_init(keys[6], keys[7], dim, (dim, dim))
    w3_t, b3 = lin_init(keys[8], keys[9], dim, (dim, dim))
    return dict(w1_t=w1_t, b1=b1, wi_t=wi_t, bi=bi,
                we_sin_t=we_t[:hdim], we_cos_t=we_t[hdim:], be=be,
                wo_t=wo_t, bo=bo, w3_t=w3_t, b3=b3)


if __name__ == "__main__":
    key = jax.random.PRNGKey(0)
    k_p, k_t, k_x, k_p2, k_t2, k_x2 = jax.random.split(key, 6)

    # Main config: lane-aligned dim (128) and two node tiles per batch element.
    batch, nodes, dim, hdim = 2, 512, 128, 32
    params = _make_params(k_p, dim, hdim)
    t = jax.random.uniform(k_t, (batch,), jnp.float32, 0.0, 100.0)
    x = jax.random.normal(k_x, (batch, nodes, dim), jnp.float32)
    ref = reference(t, x, params, hdim)

    # (a) f32 compute path — validates semantics at tight tolerance.
    out_f32 = jax.block_until_ready(
        local_mlp(t, x, params, hdim=hdim, tile_n=256, compute_dtype=jnp.float32))
    assert out_f32.shape == (batch, nodes, dim)
    err = jnp.max(jnp.abs(out_f32 - ref))
    assert jnp.allclose(out_f32, ref, atol=2e-3, rtol=2e-3), f"f32 max abs diff = {err}"

    # (b) bf16 MXU-operand path (performance configuration) — looser tolerance.
    out_bf16 = jax.block_until_ready(
        local_mlp(t, x, params, hdim=hdim, tile_n=256, compute_dtype=jnp.bfloat16))
    err = jnp.max(jnp.abs(out_bf16 - ref))
    assert jnp.allclose(out_bf16, ref, atol=5e-2, rtol=5e-2), f"bf16 max abs diff = {err}"

    # (c) non-aligned dim / nodes exercise the zero-padding path.
    b2, n2, d2, h2 = 2, 40, 48, 16
    params2 = _make_params(k_p2, d2, h2)
    t2 = jax.random.uniform(k_t2, (b2,), jnp.float32, 0.0, 100.0)
    x2 = jax.random.normal(k_x2, (b2, n2, d2), jnp.float32)
    out2 = jax.block_until_ready(
        local_mlp(t2, x2, params2, hdim=h2, tile_n=256, compute_dtype=jnp.float32))
    ref2 = reference(t2, x2, params2, h2)
    err2 = jnp.max(jnp.abs(out2 - ref2))
    assert out2.shape == (b2, n2, d2)
    assert jnp.allclose(out2, ref2, atol=2e-3, rtol=2e-3), f"padded max abs diff = {err2}"

    print("KERNEL_OK")
</pallas_src>

<mosaic_0001>
module attributes {stable_mosaic.version = 11 : i64} {
  func.func @_local_mlp_kernel(%arg0: i32, %arg1: i32, %arg2: memref<2xf32, #tpu.memory_space<smem>>, %arg3: memref<1x32xf32, #tpu.memory_space<vmem>>, %arg4: memref<8x128xf32, #tpu.memory_space<vmem>>, %arg5: memref<1x256x128xf32, #tpu.memory_space<vmem>>, %arg6: memref<128x128xf32, #tpu.memory_space<vmem>>, %arg7: memref<128x128xf32, #tpu.memory_space<vmem>>, %arg8: memref<128x128xf32, #tpu.memory_space<vmem>>, %arg9: memref<128x128xf32, #tpu.memory_space<vmem>>, %arg10: memref<32x128xf32, #tpu.memory_space<vmem>>, %arg11: memref<32x128xf32, #tpu.memory_space<vmem>>, %arg12: memref<1x256x128xf32, #tpu.memory_space<vmem>>, %arg13: memref<128x128xf32, #tpu.memory_space<vmem>>, %arg14: memref<1x128xf32, #tpu.memory_space<vmem>>) attributes {dimension_semantics = [#tpu.dimension_semantics<parallel>, #tpu.dimension_semantics<arbitrary>], iteration_bounds = array<i64: 2, 2>, scalar_prefetch = 0 : i64, scratch_operands = 2 : i64, tpu.core_type = #tpu.core_type<tc>, window_params = [{transform_indices = @transform_0, window_bounds = array<i64: 2>}, {pipeline_mode = #tpu.pipeline_mode<synchronous>, transform_indices = @transform_1, window_bounds = array<i64: 1, 32>}, {pipeline_mode = #tpu.pipeline_mode<synchronous>, transform_indices = @transform_2, window_bounds = array<i64: 8, 128>}, {transform_indices = @transform_3, window_bounds = array<i64: 1, 256, 128>}, {pipeline_mode = #tpu.pipeline_mode<synchronous>, transform_indices = @transform_4, window_bounds = array<i64: 128, 128>}, {pipeline_mode = #tpu.pipeline_mode<synchronous>, transform_indices = @transform_5, window_bounds = array<i64: 128, 128>}, {pipeline_mode = #tpu.pipeline_mode<synchronous>, transform_indices = @transform_6, window_bounds = array<i64: 128, 128>}, {pipeline_mode = #tpu.pipeline_mode<synchronous>, transform_indices = @transform_7, window_bounds = array<i64: 128, 128>}, {pipeline_mode = #tpu.pipeline_mode<synchronous>, transform_indices = @transform_8, window_bounds = array<i64: 32, 128>}, {pipeline_mode = #tpu.pipeline_mode<synchronous>, transform_indices = @transform_9, window_bounds = array<i64: 32, 128>}, {transform_indices = @transform_10, window_bounds = array<i64: 1, 256, 128>}]} {
    %c0_i32 = arith.constant 0 : i32
    %0 = arith.cmpi eq, %arg1, %c0_i32 : i32
    %1 = arith.extui %0 : i1 to i32
    %c0_i32_0 = arith.constant 0 : i32
    %2 = arith.cmpi ne, %1, %c0_i32_0 : i32
    scf.if %2 {
      %34 = arith.index_cast %arg0 : i32 to index
      %35 = memref.load %arg2[%34] : memref<2xf32, #tpu.memory_space<smem>>
      %c0_23 = arith.constant 0 : index
      %c0_24 = arith.constant 0 : index
      %36 = vector.load %arg3[%c0_23, %c0_24] : memref<1x32xf32, #tpu.memory_space<vmem>>, vector<1x32xf32>
      %37 = vector.broadcast %35 : f32 to vector<1x32xf32>
      %38 = arith.mulf %37, %36 : vector<1x32xf32>
      %39 = math.sin %38 : vector<1x32xf32>
      %c0_25 = arith.constant 0 : index
      %c0_26 = arith.constant 0 : index
      %40 = vector.load %arg10[%c0_25, %c0_26] : memref<32x128xf32, #tpu.memory_space<vmem>>, vector<32x128xf32>
      %cst_27 = arith.constant dense<0.000000e+00> : vector<1x128xf32>
      %41 = tpu.matmul %39, %40, %cst_27 {dimension_numbers = #tpu.dot_dimension_numbers<[1], [0], [0], [1], [0, 0, 1, 1], [], []>} : vector<1x32xf32>, vector<32x128xf32>, vector<1x128xf32> -> vector<1x128xf32>
      %42 = math.cos %38 : vector<1x32xf32>
      %c0_28 = arith.constant 0 : index
      %c0_29 = arith.constant 0 : index
      %43 = vector.load %arg11[%c0_28, %c0_29] : memref<32x128xf32, #tpu.memory_space<vmem>>, vector<32x128xf32>
      %cst_30 = arith.constant dense<0.000000e+00> : vector<1x128xf32>
      %44 = tpu.matmul %42, %43, %cst_30 {dimension_numbers = #tpu.dot_dimension_numbers<[1], [0], [0], [1], [0, 0, 1, 1], [], []>} : vector<1x32xf32>, vector<32x128xf32>, vector<1x128xf32> -> vector<1x128xf32>
      %45 = arith.addf %41, %44 : vector<1x128xf32>
      %c4 = arith.constant 4 : index
      %c0_31 = arith.constant 0 : index
      %46 = vector.load %arg4[%c4, %c0_31] : memref<8x128xf32, #tpu.memory_space<vmem>>, vector<1x128xf32>
      %47 = arith.addf %45, %46 : vector<1x128xf32>
      %c0_32 = arith.constant 0 : index
      %c0_33 = arith.constant 0 : index
      %48 = vector.load %arg7[%c0_32, %c0_33] : memref<128x128xf32, #tpu.memory_space<vmem>>, vector<128x128xf32>
      %49 = vector.broadcast %47 : vector<1x128xf32> to vector<128x128xf32>
      %50 = arith.mulf %48, %49 : vector<128x128xf32>
      %c0_34 = arith.constant 0 : index
      %c0_35 = arith.constant 0 : index
      %51 = vector.load %arg8[%c0_34, %c0_35] : memref<128x128xf32, #tpu.memory_space<vmem>>, vector<128x128xf32>
      %cst_36 = arith.constant dense<0.000000e+00> : vector<128x128xf32>
      %52 = tpu.matmul %50, %51, %cst_36 {dimension_numbers = #tpu.dot_dimension_numbers<[1], [0], [0], [1], [0, 0, 1, 1], [], []>} : vector<128x128xf32>, vector<128x128xf32>, vector<128x128xf32> -> vector<128x128xf32>
      %c0_37 = arith.constant 0 : index
      %c0_38 = arith.constant 0 : index
      %53 = vector.load %arg13[%c0_37, %c0_38] : memref<128x128xf32, #tpu.memory_space<vmem>>, vector<128x128xf32>
      tpu.vector_store %arg13[%c0_37, %c0_38], %52 {strides = array<i32>} : memref<128x128xf32, #tpu.memory_space<vmem>>, vector<128x128xf32>,
      %c1 = arith.constant 1 : index
      %c0_39 = arith.constant 0 : index
      %54 = vector.load %arg4[%c1, %c0_39] : memref<8x128xf32, #tpu.memory_space<vmem>>, vector<1x128xf32>
      %55 = arith.mulf %54, %47 : vector<1x128xf32>
      %c0_40 = arith.constant 0 : index
      %c0_41 = arith.constant 0 : index
      %56 = vector.load %arg8[%c0_40, %c0_41] : memref<128x128xf32, #tpu.memory_space<vmem>>, vector<128x128xf32>
      %cst_42 = arith.constant dense<0.000000e+00> : vector<1x128xf32>
      %57 = tpu.matmul %55, %56, %cst_42 {dimension_numbers = #tpu.dot_dimension_numbers<[1], [0], [0], [1], [0, 0, 1, 1], [], []>} : vector<1x128xf32>, vector<128x128xf32>, vector<1x128xf32> -> vector<1x128xf32>
      %c2 = arith.constant 2 : index
      %c0_43 = arith.constant 0 : index
      %58 = vector.load %arg4[%c2, %c0_43] : memref<8x128xf32, #tpu.memory_space<vmem>>, vector<1x128xf32>
      %59 = arith.addf %57, %58 : vector<1x128xf32>
      %c0_44 = arith.constant 0 : index
      %c0_45 = arith.constant 0 : index
      %60 = vector.load %arg14[%c0_44, %c0_45] : memref<1x128xf32, #tpu.memory_space<vmem>>, vector<1x128xf32>
      tpu.vector_store %arg14[%c0_44, %c0_45], %59 {strides = array<i32>} : memref<1x128xf32, #tpu.memory_space<vmem>>, vector<1x128xf32>,
    } else {
    }
    %c0 = arith.constant 0 : index
    %c0_1 = arith.constant 0 : index
    %c0_2 = arith.constant 0 : index
    %3 = vector.load %arg5[%c0, %c0_1, %c0_2] : memref<1x256x128xf32, #tpu.memory_space<vmem>>, vector<1x256x128xf32>
    %4 = vector.shape_cast %3 : vector<1x256x128xf32> to vector<256x128xf32>
    %c0_3 = arith.constant 0 : index
    %c0_4 = arith.constant 0 : index
    %5 = vector.load %arg6[%c0_3, %c0_4] : memref<128x128xf32, #tpu.memory_space<vmem>>, vector<128x128xf32>
    %cst = arith.constant dense<0.000000e+00> : vector<256x128xf32>
    %6 = tpu.matmul %4, %5, %cst {dimension_numbers = #tpu.dot_dimension_numbers<[1], [0], [0], [1], [0, 0, 1, 1], [], []>} : vector<256x128xf32>, vector<128x128xf32>, vector<256x128xf32> -> vector<256x128xf32>
    %c0_5 = arith.constant 0 : index
    %c0_6 = arith.constant 0 : index
    %7 = vector.load %arg4[%c0_5, %c0_6] : memref<8x128xf32, #tpu.memory_space<vmem>>, vector<1x128xf32>
    %8 = vector.broadcast %7 : vector<1x128xf32> to vector<256x128xf32>
    %9 = arith.addf %6, %8 : vector<256x128xf32>
    %cst_7 = arith.constant 0.000000e+00 : f32
    %10 = vector.broadcast %cst_7 : f32 to vector<256x128xf32>
    %11 = arith.cmpf oge, %9, %10 : vector<256x128xf32>
    %cst_8 = arith.constant 1.000000e-01 : f32
    %12 = vector.broadcast %cst_8 : f32 to vector<256x128xf32>
    %13 = arith.mulf %12, %9 : vector<256x128xf32>
    %14 = arith.select %11, %9, %13 : vector<256x128xi1>, vector<256x128xf32>
    %c0_9 = arith.constant 0 : index
    %c0_10 = arith.constant 0 : index
    %15 = vector.load %arg13[%c0_9, %c0_10] : memref<128x128xf32, #tpu.memory_space<vmem>>, vector<128x128xf32>
    %cst_11 = arith.constant dense<0.000000e+00> : vector<256x128xf32>
    %16 = tpu.matmul %14, %15, %cst_11 {dimension_numbers = #tpu.dot_dimension_numbers<[1], [0], [0], [1], [0, 0, 1, 1], [], []>} : vector<256x128xf32>, vector<128x128xf32>, vector<256x128xf32> -> vector<256x128xf32>
    %c0_12 = arith.constant 0 : index
    %c0_13 = arith.constant 0 : index
    %17 = vector.load %arg14[%c0_12, %c0_13] : memref<1x128xf32, #tpu.memory_space<vmem>>, vector<1x128xf32>
    %18 = vector.broadcast %17 : vector<1x128xf32> to vector<256x128xf32>
    %19 = arith.addf %16, %18 : vector<256x128xf32>
    %cst_14 = arith.constant 0.000000e+00 : f32
    %20 = vector.broadcast %cst_14 : f32 to vector<256x128xf32>
    %21 = arith.cmpf oge, %19, %20 : vector<256x128xf32>
    %cst_15 = arith.constant 1.000000e-01 : f32
    %22 = vector.broadcast %cst_15 : f32 to vector<256x128xf32>
    %23 = arith.mulf %22, %19 : vector<256x128xf32>
    %24 = arith.select %21, %19, %23 : vector<256x128xi1>, vector<256x128xf32>
    %25 = arith.addf %4, %24 : vector<256x128xf32>
    %c0_16 = arith.constant 0 : index
    %c0_17 = arith.constant 0 : index
    %26 = vector.load %arg9[%c0_16, %c0_17] : memref<128x128xf32, #tpu.memory_space<vmem>>, vector<128x128xf32>
    %cst_18 = arith.constant dense<0.000000e+00> : vector<256x128xf32>
    %27 = tpu.matmul %25, %26, %cst_18 {dimension_numbers = #tpu.dot_dimension_numbers<[1], [0], [0], [1], [0, 0, 1, 1], [], []>} : vector<256x128xf32>, vector<128x128xf32>, vector<256x128xf32> -> vector<256x128xf32>
    %c3 = arith.constant 3 : index
    %c0_19 = arith.constant 0 : index
    %28 = vector.load %arg4[%c3, %c0_19] : memref<8x128xf32, #tpu.memory_space<vmem>>, vector<1x128xf32>
    %29 = vector.broadcast %28 : vector<1x128xf32> to vector<256x128xf32>
    %30 = arith.addf %27, %29 : vector<256x128xf32>
    %c0_20 = arith.constant 0 : index
    %c0_21 = arith.constant 0 : index
    %c0_22 = arith.constant 0 : index
    %31 = vector.load %arg12[%c0_20, %c0_21, %c0_22] : memref<1x256x128xf32, #tpu.memory_space<vmem>>, vector<1x256x128xf32>
    %32 = vector.shape_cast %31 : vector<1x256x128xf32> to vector<256x128xf32>
    %33 = vector.shape_cast %30 : vector<256x128xf32> to vector<1x256x128xf32>
    tpu.vector_store %arg12[%c0_20, %c0_21, %c0_22], %33 {strides = array<i32>} : memref<1x256x128xf32, #tpu.memory_space<vmem>>, vector<1x256x128xf32>,
    return
  }
  func.func @transform_0(%arg0: i32, %arg1: i32) -> i32 {
    %c0_i32 = arith.constant 0 : i32
    %c0_i32_0 = arith.constant 0 : i32
    return %c0_i32 : i32
  }
  func.func @transform_1(%arg0: i32, %arg1: i32) -> (i32, i32) {
    %c0_i32 = arith.constant 0 : i32
    %c0_i32_0 = arith.constant 0 : i32
    %c0_i32_1 = arith.constant 0 : i32
    return %c0_i32, %c0_i32_0 : i32, i32
  }
  func.func @transform_2(%arg0: i32, %arg1: i32) -> (i32, i32) {
    %c0_i32 = arith.constant 0 : i32
    %c0_i32_0 = arith.constant 0 : i32
    %c0_i32_1 = arith.constant 0 : i32
    return %c0_i32, %c0_i32_0 : i32, i32
  }
  func.func @transform_3(%arg0: i32, %arg1: i32) -> (i32, i32, i32) {
    %c0_i32 = arith.constant 0 : i32
    %c0_i32_0 = arith.constant 0 : i32
    return %arg0, %arg1, %c0_i32 : i32, i32, i32
  }
  func.func @transform_4(%arg0: i32, %arg1: i32) -> (i32, i32) {
    %c0_i32 = arith.constant 0 : i32
    %c0_i32_0 = arith.constant 0 : i32
    %c0_i32_1 = arith.constant 0 : i32
    return %c0_i32, %c0_i32_0 : i32, i32
  }
  func.func @transform_5(%arg0: i32, %arg1: i32) -> (i32, i32) {
    %c0_i32 = arith.constant 0 : i32
    %c0_i32_0 = arith.constant 0 : i32
    %c0_i32_1 = arith.constant 0 : i32
    return %c0_i32, %c0_i32_0 : i32, i32
  }
  func.func @transform_6(%arg0: i32, %arg1: i32) -> (i32, i32) {
    %c0_i32 = arith.constant 0 : i32
    %c0_i32_0 = arith.constant 0 : i32
    %c0_i32_1 = arith.constant 0 : i32
    return %c0_i32, %c0_i32_0 : i32, i32
  }
  func.func @transform_7(%arg0: i32, %arg1: i32) -> (i32, i32) {
    %c0_i32 = arith.constant 0 : i32
    %c0_i32_0 = arith.constant 0 : i32
    %c0_i32_1 = arith.constant 0 : i32
    return %c0_i32, %c0_i32_0 : i32, i32
  }
  func.func @transform_8(%arg0: i32, %arg1: i32) -> (i32, i32) {
    %c0_i32 = arith.constant 0 : i32
    %c0_i32_0 = arith.constant 0 : i32
    %c0_i32_1 = arith.constant 0 : i32
    return %c0_i32, %c0_i32_0 : i32, i32
  }
  func.func @transform_9(%arg0: i32, %arg1: i32) -> (i32, i32) {
    %c0_i32 = arith.constant 0 : i32
    %c0_i32_0 = arith.constant 0 : i32
    %c0_i32_1 = arith.constant 0 : i32
    return %c0_i32, %c0_i32_0 : i32, i32
  }
  func.func @transform_10(%arg0: i32, %arg1: i32) -> (i32, i32, i32) {
    %c0_i32 = arith.constant 0 : i32
    %c0_i32_0 = arith.constant 0 : i32
    return %arg0, %arg1, %c0_i32 : i32, i32, i32
  }
}

</mosaic_0001>

<llo_original>
// kernel: tpu_custom_call.1
$region0: #{tpu_custom_call.1}
  #allocation0 [shape = 'u32[]', space=smem, size = 0x4, offset = 0x4, fixed_abs, tag = 'smem constant byte address 0x4 - core index']
  #allocation1 [shape = 'u32[144,128]{1,0:T(1,128)}', space=vmem, size = 0x12000, scoped, tag = 'internal scratch']
  #allocation2 [shape = 'f32[128,128]{1,0:T(8,128)}', space=vmem, size = 0x10000, scoped, tag = 'scratch operand']
  #allocation3 [shape = 'f32[1,128]{1,0:T(1,128)}', space=vmem, size = 0x200, scoped, tag = 'scratch operand']
  %s0 = inlined_call_operand.hbm [shape: f32[2], index: 0, kind: input, shape index: {}]
  %s1 = inlined_call_operand.vmem [shape: f32[1,32], index: 1, kind: input, shape index: {}]
  %s2 = inlined_call_operand.hbm [shape: f32[8,128], index: 2, kind: input, shape index: {}]
  %s3 = inlined_call_operand.hbm [shape: f32[2,512,128], index: 3, kind: input, shape index: {}]
  %s4 = inlined_call_operand.hbm [shape: f32[128,128], index: 4, kind: input, shape index: {}]
  %s5 = inlined_call_operand.hbm [shape: f32[128,128], index: 5, kind: input, shape index: {}]
  %s6 = inlined_call_operand.hbm [shape: f32[128,128], index: 6, kind: input, shape index: {}]
  %s7 = inlined_call_operand.hbm [shape: f32[128,128], index: 7, kind: input, shape index: {}]
  %s8 = inlined_call_operand.hbm [shape: f32[32,128], index: 8, kind: input, shape index: {}]
  %s9 = inlined_call_operand.hbm [shape: f32[32,128], index: 9, kind: input, shape index: {}]
  %s10 = inlined_call_operand.hbm [shape: f32[2,512,128], index: 10, kind: output, shape index: {}]
  %s11 = sld [smem:[#allocation0]]
  $region113: #{tpu_custom_call.1} parent=0
    _
  %s13 = ssub.s32 1, %s11
  %s14 = scalar_select 0, %s13, %s11
  $region1: #{tpu_custom_call.1} parent=0
    #allocation4 [shape = 'u8[512]{0}', space=smem, size = 0x200, scoped, tag = 'input window, operand 0, single buffered']
    #allocation5 [shape = 's32[2]{0}', space=sflag, size = 0x8, scoped, tag = 'scoped memory for tpu_custom_call.1']
    #allocation6 [shape = 's32[2]{0}', space=sflag, size = 0x8, scoped, tag = 'scoped memory for tpu_custom_call.1']
    #allocation7 [shape = 's32[2]{0}', space=sflag, size = 0x8, scoped, tag = 'scoped memory for tpu_custom_call.1']
    #allocation8 [shape = 'u8[4096]{0}', space=vmem, size = 0x1000, scoped, tag = 'input window, operand 2, single buffered']
    #allocation9 [shape = 'u8[262144]{0}', space=vmem, size = 0x40000, scoped, tag = 'input window, operand 3']
    #allocation10 [shape = 's32[2]{0}', space=sflag, size = 0x8, scoped, tag = 'scoped memory for tpu_custom_call.1']
    #allocation11 [shape = 'u8[65536]{0}', space=vmem, size = 0x10000, scoped, tag = 'input window, operand 4, single buffered']
    #allocation12 [shape = 'u8[65536]{0}', space=vmem, size = 0x10000, scoped, tag = 'input window, operand 5, single buffered']
    #allocation13 [shape = 's32[1]{0}', space=sflag, size = 0x4, scoped, tag = 'scoped memory for tpu_custom_call.1']
    #allocation14 [shape = 'u8[65536]{0}', space=vmem, size = 0x10000, scoped, tag = 'input window, operand 6, single buffered']
    #allocation15 [shape = 'u8[65536]{0}', space=vmem, size = 0x10000, scoped, tag = 'input window, operand 7, single buffered']
    #allocation16 [shape = 's32[1]{0}', space=sflag, size = 0x4, scoped, tag = 'scoped memory for tpu_custom_call.1']
    #allocation17 [shape = 'u8[16384]{0}', space=vmem, size = 0x4000, scoped, tag = 'input window, operand 8, single buffered']
    #allocation18 [shape = 'u8[16384]{0}', space=vmem, size = 0x4000, scoped, tag = 'input window, operand 9, single buffered']
    #allocation19 [shape = 's32[1]{0}', space=sflag, size = 0x4, scoped, tag = 'scoped memory for tpu_custom_call.1']
    #allocation20 [shape = 'u8[262144]{0}', space=vmem, size = 0x40000, scoped, tag = 'output window, operand 0']
    %15 = vsyncpa [#allocation7], 0
    %16 = vsyncpa [#allocation5], 0
    %17 = vsyncpa [#allocation10], 0
    %s18 = scalar_lea.sflag [#allocation10], 1
    %19 = vsyncpa %s18, 0
    %20 = vsyncpa [#allocation13], 0
    %21 = vsyncpa [#allocation16], 0
    %22 = vsyncpa [#allocation19], 0
    %23 = vsyncpa [#allocation6], 0
    %s24 = scalar_lea.sflag [#allocation6], 1
    %25 = vsyncpa %s24, 0
    loop: start=0, step=1, limit=6
    $region2: #{tpu_custom_call.1} parent=1 // loop_pre_header
      _
    $region3: #{tpu_custom_call.1} parent=1 // loop_header
      %s27 = sphi 0, %s31
      %p28 = scmp.ge.s32.totalorder %s27, 6
      %s34 = sphi 0, %s46
      %s35 = sphi 0, %s42
      %s36 = sphi 0, %s34
      %s37 = sphi 0, %s35
      %s38 = sphi 0, %s36
      %s39 = sphi 0, %s37
      %s47 = sphi 0, %s47
      %s49 = sphi 0, %s47
      %s50 = sphi 0, %s49
      %s64 = sphi 0, %s50
      %s68 = sphi 0, %s68
      %s70 = sphi 0, %s68
      %s71 = sphi 0, %s70
      %s85 = sphi 0, %s71
      %s89 = sphi 0, %s89
      %s91 = sphi 0, %s89
      %s92 = sphi 0, %s91
      %s106 = sphi 0, %s92
      %s114 = sphi 0, %s116
      %s117 = sphi 0, %s114
      %s118 = sphi 0, %s117
      %s134 = sphi 0, %s118
      %s138 = sphi 0, %s138
      %s140 = sphi 0, %s138
      %s141 = sphi 0, %s140
      %s155 = sphi 0, %s141
      %s159 = sphi 0, %s159
      %s161 = sphi 0, %s159
      %s162 = sphi 0, %s161
      %s176 = sphi 0, %s162
      %s180 = sphi 0, %s180
      %s182 = sphi 0, %s180
      %s183 = sphi 0, %s182
      %s197 = sphi 0, %s183
      %s201 = sphi 0, %s201
      %s203 = sphi 0, %s201
      %s204 = sphi 0, %s203
      %s218 = sphi 0, %s204
      %s222 = sphi 0, %s222
      %s224 = sphi 0, %s222
      %s225 = sphi 0, %s224
      %s239 = sphi 0, %s225
      %s243 = sphi 0, %s243
      %s245 = sphi 0, %s243
      %s246 = sphi 0, %s245
      %s260 = sphi 0, %s246
      %s268 = sphi 0, %s270
      %s271 = sphi 0, %s268
      %s272 = sphi 0, %s271
      %s288 = sphi 0, %s272
    $region4: #{tpu_custom_call.1} parent=1 // loop_header_branch
      %30 = sbr.rel (%p28) target = $region8
    $region5: #{tpu_custom_call.1} parent=1 // loop_body
      %s32 = ssub.s32 %s27, 1
      %s33 = ssub.s32 %s27, 2
      %s40 = sadd.s32 1, %s35
      %p41 = scmp.ge.s32.totalorder %s40, 2
      %s42 = scalar_select %p41, 0, %s40
      %s43 = sadd.s32 1, %s34
      %s44 = scalar_select %p41, %s43, %s34
      %p45 = scmp.ge.s32.totalorder %s44, 2
      %s46 = scalar_select %p45, 0, %s44
      %s48 = sadd.s32 %s47, 1
      %p51 = scmp.eq.s32.totalorder %s27, 3
      %p52 = scmp.ne.s32.totalorder %s47, %s49
      %p53 = scmp.eq.s32.totalorder %s27, 0
      %p54 = por %p52, %p53
      %p55 = scmp.ne.s32.totalorder %s47, %s49
      %p56 = scmp.eq.s32.totalorder %s32, 3
      %p57 = por %p55, %p56
      %p58 = scmp.ne.s32.totalorder %s49, %s50
      %p59 = scmp.eq.s32.totalorder %s32, 0
      %p60 = por %p58, %p59
      %p61 = scmp.ne.s32.totalorder %s49, %s50
      %p62 = scmp.eq.s32.totalorder %s33, 3
      %p63 = por %p61, %p62
      %p65 = scmp.ne.s32.totalorder %s50, %s64
      %p66 = scmp.eq.s32.totalorder %s33, 0
      %p67 = por %p65, %p66
      %s69 = sadd.s32 %s68, 1
      %p72 = scmp.eq.s32.totalorder %s27, 3
      %p73 = scmp.ne.s32.totalorder %s68, %s70
      %p74 = scmp.eq.s32.totalorder %s27, 0
      %p75 = por %p73, %p74
      %p76 = scmp.ne.s32.totalorder %s68, %s70
      %p77 = scmp.eq.s32.totalorder %s32, 3
      %p78 = por %p76, %p77
      %p79 = scmp.ne.s32.totalorder %s70, %s71
      %p80 = scmp.eq.s32.totalorder %s32, 0
      %p81 = por %p79, %p80
      %p82 = scmp.ne.s32.totalorder %s70, %s71
      %p83 = scmp.eq.s32.totalorder %s33, 3
      %p84 = por %p82, %p83
      %p86 = scmp.ne.s32.totalorder %s71, %s85
      %p87 = scmp.eq.s32.totalorder %s33, 0
      %p88 = por %p86, %p87
      %s90 = sadd.s32 %s89, 1
      %p93 = scmp.eq.s32.totalorder %s27, 3
      %p94 = scmp.ne.s32.totalorder %s89, %s91
      %p95 = scmp.eq.s32.totalorder %s27, 0
      %p96 = por %p94, %p95
      %p97 = scmp.ne.s32.totalorder %s89, %s91
      %p98 = scmp.eq.s32.totalorder %s32, 3
      %p99 = por %p97, %p98
      %p100 = scmp.ne.s32.totalorder %s91, %s92
      %p101 = scmp.eq.s32.totalorder %s32, 0
      %p102 = por %p100, %p101
      %p103 = scmp.ne.s32.totalorder %s91, %s92
      %p104 = scmp.eq.s32.totalorder %s33, 3
      %p105 = por %p103, %p104
      %p107 = scmp.ne.s32.totalorder %s92, %s106
      %p108 = scmp.eq.s32.totalorder %s33, 0
      %p109 = por %p107, %p108
      %s110 = ssub.s32 %s34, %s46
      %s111 = ssub.s32 %s35, %s42
      %s112 = sor.u32 %s110, %s111
      %p113 = scmp.eq.s32.totalorder %s112, 0
      %s115 = sadd.s32 %s114, 1
      %s116 = scalar_select %p113, %s114, %s115
      %p119 = pneg %p113
      %p120 = scmp.eq.s32.totalorder %s27, 3
      %p121 = por %p119, %p120
      %p122 = scmp.ne.s32.totalorder %s114, %s117
      %p123 = scmp.eq.s32.totalorder %s27, 0
      %p124 = por %p122, %p123
      %p125 = scmp.ne.s32.totalorder %s114, %s117
      %p126 = scmp.eq.s32.totalorder %s32, 3
      %p127 = por %p125, %p126
      %p128 = scmp.ne.s32.totalorder %s117, %s118
      %p129 = scmp.eq.s32.totalorder %s32, 0
      %p130 = por %p128, %p129
      %p131 = scmp.ne.s32.totalorder %s117, %s118
      %p132 = scmp.eq.s32.totalorder %s33, 3
      %p133 = por %p131, %p132
      %p135 = scmp.ne.s32.totalorder %s118, %s134
      %p136 = scmp.eq.s32.totalorder %s33, 0
      %p137 = por %p135, %p136
      %s139 = sadd.s32 %s138, 1
      %p142 = scmp.eq.s32.totalorder %s27, 3
      %p143 = scmp.ne.s32.totalorder %s138, %s140
      %p144 = scmp.eq.s32.totalorder %s27, 0
      %p145 = por %p143, %p144
      %p146 = scmp.ne.s32.totalorder %s138, %s140
      %p147 = scmp.eq.s32.totalorder %s32, 3
      %p148 = por %p146, %p147
      %p149 = scmp.ne.s32.totalorder %s140, %s141
      %p150 = scmp.eq.s32.totalorder %s32, 0
      %p151 = por %p149, %p150
      %p152 = scmp.ne.s32.totalorder %s140, %s141
      %p153 = scmp.eq.s32.totalorder %s33, 3
      %p154 = por %p152, %p153
      %p156 = scmp.ne.s32.totalorder %s141, %s155
      %p157 = scmp.eq.s32.totalorder %s33, 0
      %p158 = por %p156, %p157
      %s160 = sadd.s32 %s159, 1
      %p163 = scmp.eq.s32.totalorder %s27, 3
      %p164 = scmp.ne.s32.totalorder %s159, %s161
      %p165 = scmp.eq.s32.totalorder %s27, 0
      %p166 = por %p164, %p165
      %p167 = scmp.ne.s32.totalorder %s159, %s161
      %p168 = scmp.eq.s32.totalorder %s32, 3
      %p169 = por %p167, %p168
      %p170 = scmp.ne.s32.totalorder %s161, %s162
      %p171 = scmp.eq.s32.totalorder %s32, 0
      %p172 = por %p170, %p171
      %p173 = scmp.ne.s32.totalorder %s161, %s162
      %p174 = scmp.eq.s32.totalorder %s33, 3
      %p175 = por %p173, %p174
      %p177 = scmp.ne.s32.totalorder %s162, %s176
      %p178 = scmp.eq.s32.totalorder %s33, 0
      %p179 = por %p177, %p178
      %s181 = sadd.s32 %s180, 1
      %p184 = scmp.eq.s32.totalorder %s27, 3
      %p185 = scmp.ne.s32.totalorder %s180, %s182
      %p186 = scmp.eq.s32.totalorder %s27, 0
      %p187 = por %p185, %p186
      %p188 = scmp.ne.s32.totalorder %s180, %s182
      %p189 = scmp.eq.s32.totalorder %s32, 3
      %p190 = por %p188, %p189
      %p191 = scmp.ne.s32.totalorder %s182, %s183
      %p192 = scmp.eq.s32.totalorder %s32, 0
      %p193 = por %p191, %p192
      %p194 = scmp.ne.s32.totalorder %s182, %s183
      %p195 = scmp.eq.s32.totalorder %s33, 3
      %p196 = por %p194, %p195
      %p198 = scmp.ne.s32.totalorder %s183, %s197
      %p199 = scmp.eq.s32.totalorder %s33, 0
      %p200 = por %p198, %p199
      %s202 = sadd.s32 %s201, 1
      %p205 = scmp.eq.s32.totalorder %s27, 3
      %p206 = scmp.ne.s32.totalorder %s201, %s203
      %p207 = scmp.eq.s32.totalorder %s27, 0
      %p208 = por %p206, %p207
      %p209 = scmp.ne.s32.totalorder %s201, %s203
      %p210 = scmp.eq.s32.totalorder %s32, 3
      %p211 = por %p209, %p210
      %p212 = scmp.ne.s32.totalorder %s203, %s204
      %p213 = scmp.eq.s32.totalorder %s32, 0
      %p214 = por %p212, %p213
      %p215 = scmp.ne.s32.totalorder %s203, %s204
      %p216 = scmp.eq.s32.totalorder %s33, 3
      %p217 = por %p215, %p216
      %p219 = scmp.ne.s32.totalorder %s204, %s218
      %p220 = scmp.eq.s32.totalorder %s33, 0
      %p221 = por %p219, %p220
      %s223 = sadd.s32 %s222, 1
      %p226 = scmp.eq.s32.totalorder %s27, 3
      %p227 = scmp.ne.s32.totalorder %s222, %s224
      %p228 = scmp.eq.s32.totalorder %s27, 0
      %p229 = por %p227, %p228
      %p230 = scmp.ne.s32.totalorder %s222, %s224
      %p231 = scmp.eq.s32.totalorder %s32, 3
      %p232 = por %p230, %p231
      %p233 = scmp.ne.s32.totalorder %s224, %s225
      %p234 = scmp.eq.s32.totalorder %s32, 0
      %p235 = por %p233, %p234
      %p236 = scmp.ne.s32.totalorder %s224, %s225
      %p237 = scmp.eq.s32.totalorder %s33, 3
      %p238 = por %p236, %p237
      %p240 = scmp.ne.s32.totalorder %s225, %s239
      %p241 = scmp.eq.s32.totalorder %s33, 0
      %p242 = por %p240, %p241
      %s244 = sadd.s32 %s243, 1
      %p247 = scmp.eq.s32.totalorder %s27, 3
      %p248 = scmp.ne.s32.totalorder %s243, %s245
      %p249 = scmp.eq.s32.totalorder %s27, 0
      %p250 = por %p248, %p249
      %p251 = scmp.ne.s32.totalorder %s243, %s245
      %p252 = scmp.eq.s32.totalorder %s32, 3
      %p253 = por %p251, %p252
      %p254 = scmp.ne.s32.totalorder %s245, %s246
      %p255 = scmp.eq.s32.totalorder %s32, 0
      %p256 = por %p254, %p255
      %p257 = scmp.ne.s32.totalorder %s245, %s246
      %p258 = scmp.eq.s32.totalorder %s33, 3
      %p259 = por %p257, %p258
      %p261 = scmp.ne.s32.totalorder %s246, %s260
      %p262 = scmp.eq.s32.totalorder %s33, 0
      %p263 = por %p261, %p262
      %s264 = ssub.s32 %s34, %s46
      %s265 = ssub.s32 %s35, %s42
      %s266 = sor.u32 %s264, %s265
      %p267 = scmp.eq.s32.totalorder %s266, 0
      %s269 = sadd.s32 %s268, 1
      %s270 = scalar_select %p267, %s268, %s269
      %p273 = pneg %p267
      %p274 = scmp.eq.s32.totalorder %s27, 3
      %p275 = por %p273, %p274
      %p276 = scmp.ne.s32.totalorder %s268, %s271
      %p277 = scmp.eq.s32.totalorder %s27, 0
      %p278 = por %p276, %p277
      %p279 = scmp.ne.s32.totalorder %s268, %s271
      %p280 = scmp.eq.s32.totalorder %s32, 3
      %p281 = por %p279, %p280
      %p282 = scmp.ne.s32.totalorder %s271, %s272
      %p283 = scmp.eq.s32.totalorder %s32, 0
      %p284 = por %p282, %p283
      %p285 = scmp.ne.s32.totalorder %s271, %s272
      %p286 = scmp.eq.s32.totalorder %s33, 3
      %p287 = por %p285, %p286
      %p289 = scmp.ne.s32.totalorder %s272, %s288
      %p290 = scmp.eq.s32.totalorder %s33, 0
      %p291 = por %p289, %p290
      %p292 = scmp.le.s32.totalorder 1, %s27
      %p293 = scmp.lt.s32.totalorder %s27, 5
      %p294 = pnand %p292, %p293
      %p295 = pneg %p294
      // Predicated region
      $region9: #{tpu_custom_call.1} parent=5 // pred_check
        _
      $region10: #{tpu_custom_call.1} parent=5 // pred_check_branch
        %297 = sbr.rel (%p294) target = $region12
      $region11: #{tpu_custom_call.1} parent=5 // pred_region
        %s298 = ssub.s32 %s27, 1
        // Predicated region
        $region13: #{tpu_custom_call.1} parent=11 // pred_check
          %p299 = pneg %p60
        $region14: #{tpu_custom_call.1} parent=11 // pred_check_branch
          %301 = sbr.rel (%p299) target = $region16
        $region15: #{tpu_custom_call.1} parent=11 // pred_region
          %s303 = ssub.s32 16, 16
          %304 = vsyncadd [#allocation7], %s303
          %307 = dma.hbm_to_smem %s0, 16, [#allocation4], [#allocation7]
        $region16: #{tpu_custom_call.1} parent=11 // pred_fallthru
          _
        // Predicated region
        $region17: #{tpu_custom_call.1} parent=11 // pred_check
          %p308 = pneg %p81
        $region18: #{tpu_custom_call.1} parent=11 // pred_check_branch
          %310 = sbr.rel (%p308) target = $region20
        $region19: #{tpu_custom_call.1} parent=11 // pred_region
          _
        $region20: #{tpu_custom_call.1} parent=11 // pred_fallthru
          _
        // Predicated region
        $region21: #{tpu_custom_call.1} parent=11 // pred_check
          %p311 = pneg %p102
        $region22: #{tpu_custom_call.1} parent=11 // pred_check_branch
          %313 = sbr.rel (%p311) target = $region24
        $region23: #{tpu_custom_call.1} parent=11 // pred_region
          %s315 = ssub.s32 128, 128
          %316 = vsyncadd [#allocation5], %s315
          %s318 = sshll.u32 [#allocation8], 4
          %s319 = int_to_ptr.vmem [resolvable:$true] %s318
          %321 = dma.hbm_to_vmem [thread:$0]  %s2, 128, %s319, [#allocation5]
        $region24: #{tpu_custom_call.1} parent=11 // pred_fallthru
          _
        // Predicated region
        $region25: #{tpu_custom_call.1} parent=11 // pred_check
          %p322 = pneg %p151
        $region26: #{tpu_custom_call.1} parent=11 // pred_check_branch
          %324 = sbr.rel (%p322) target = $region28
        $region27: #{tpu_custom_call.1} parent=11 // pred_region
          %s326 = ssub.s32 2048, 2048
          %327 = vsyncadd [#allocation10], %s326
          %s328 = sshll.u32 [#allocation11], 4
          %s329 = int_to_ptr.vmem [resolvable:$true] %s328
          %334 = dma.hbm_to_vmem [thread:$0]  %s4, 2048, %s329, [#allocation10], 128, 128, 8
        $region28: #{tpu_custom_call.1} parent=11 // pred_fallthru
          _
        // Predicated region
        $region29: #{tpu_custom_call.1} parent=11 // pred_check
          %p335 = pneg %p172
        $region30: #{tpu_custom_call.1} parent=11 // pred_check_branch
          %337 = sbr.rel (%p335) target = $region32
        $region31: #{tpu_custom_call.1} parent=11 // pred_region
          %s339 = ssub.s32 2048, 2048
          %340 = vsyncadd [#allocation13], %s339
          %s341 = sshll.u32 [#allocation12], 4
          %s342 = int_to_ptr.vmem [resolvable:$true] %s341
          %347 = dma.hbm_to_vmem [thread:$0]  %s5, 2048, %s342, [#allocation13], 128, 128, 8
        $region32: #{tpu_custom_call.1} parent=11 // pred_fallthru
          _
        // Predicated region
        $region33: #{tpu_custom_call.1} parent=11 // pred_check
          %p348 = pneg %p193
        $region34: #{tpu_custom_call.1} parent=11 // pred_check_branch
          %350 = sbr.rel (%p348) target = $region36
        $region35: #{tpu_custom_call.1} parent=11 // pred_region
          %s352 = ssub.s32 2048, 2048
          %353 = vsyncadd [#allocation13], %s352
          %s354 = sshll.u32 [#allocation14], 4
          %s355 = int_to_ptr.vmem [resolvable:$true] %s354
          %360 = dma.hbm_to_vmem [thread:$0]  %s6, 2048, %s355, [#allocation13], 128, 128, 8
        $region36: #{tpu_custom_call.1} parent=11 // pred_fallthru
          _
        // Predicated region
        $region37: #{tpu_custom_call.1} parent=11 // pred_check
          %p361 = pneg %p214
        $region38: #{tpu_custom_call.1} parent=11 // pred_check_branch
          %363 = sbr.rel (%p361) target = $region40
        $region39: #{tpu_custom_call.1} parent=11 // pred_region
          %s365 = ssub.s32 2048, 2048
          %366 = vsyncadd [#allocation16], %s365
          %s367 = sshll.u32 [#allocation15], 4
          %s368 = int_to_ptr.vmem [resolvable:$true] %s367
          %373 = dma.hbm_to_vmem [thread:$0]  %s7, 2048, %s368, [#allocation16], 128, 128, 8
        $region40: #{tpu_custom_call.1} parent=11 // pred_fallthru
          _
        // Predicated region
        $region41: #{tpu_custom_call.1} parent=11 // pred_check
          %p374 = pneg %p235
        $region42: #{tpu_custom_call.1} parent=11 // pred_check_branch
          %376 = sbr.rel (%p374) target = $region44
        $region43: #{tpu_custom_call.1} parent=11 // pred_region
          %s378 = ssub.s32 512, 512
          %379 = vsyncadd [#allocation16], %s378
          %s380 = sshll.u32 [#allocation17], 4
          %s381 = int_to_ptr.vmem [resolvable:$true] %s380
          %386 = dma.hbm_to_vmem [thread:$0]  %s8, 512, %s381, [#allocation16], 128, 128, 8
        $region44: #{tpu_custom_call.1} parent=11 // pred_fallthru
          _
        // Predicated region
        $region45: #{tpu_custom_call.1} parent=11 // pred_check
          %p387 = pneg %p256
        $region46: #{tpu_custom_call.1} parent=11 // pred_check_branch
          %389 = sbr.rel (%p387) target = $region48
        $region47: #{tpu_custom_call.1} parent=11 // pred_region
          %s391 = ssub.s32 512, 512
          %392 = vsyncadd [#allocation19], %s391
          %s393 = sshll.u32 [#allocation18], 4
          %s394 = int_to_ptr.vmem [resolvable:$true] %s393
          %399 = dma.hbm_to_vmem [thread:$0]  %s9, 512, %s394, [#allocation19], 128, 128, 8
        $region48: #{tpu_custom_call.1} parent=11 // pred_fallthru
          _
      $region12: #{tpu_custom_call.1} parent=5 // pred_fallthru
        _
      %p400 = scmp.lt.s32.totalorder %s27, 4
      // Predicated region
      $region49: #{tpu_custom_call.1} parent=5 // pred_check
        %p401 = pneg %p400
      $region50: #{tpu_custom_call.1} parent=5 // pred_check_branch
        %403 = sbr.rel (%p401) target = $region52
      $region51: #{tpu_custom_call.1} parent=5 // pred_region
        // Predicated region
        $region53: #{tpu_custom_call.1} parent=51 // pred_check
          %p404 = pneg %p124
        $region54: #{tpu_custom_call.1} parent=51 // pred_check_branch
          %406 = sbr.rel (%p404) target = $region56
        $region55: #{tpu_custom_call.1} parent=51 // pred_region
          %s407 = sand.u32 %s27, 1
          %s408 = scalar_lea.sflag [#allocation10], %s407
          %s409 = sand.u32 %s114, 1
          %s410 = smul.addr %s409, 256
          %s411 = scalar_lea.vmem [#allocation9], %s410
          %s412 = smul.u32 32, %s35
          %s414 = ssub.s32 4096, 4096
          %415 = vsyncadd %s408, %s414
          %s416 = smul.addr %s34, 64
          %s417 = sadd.s32 %s412, %s416
          %s418 = smul.addr %s417, 128
          %s419 = scalar_lea.hbm %s3, %s418
          %s420 = sshll.u32 %s411, 4
          %s421 = int_to_ptr.vmem [resolvable:$true] %s420
          %426 = dma.hbm_to_vmem [thread:$0]  %s419, 4096, %s421, %s408, 128, 128, 8
        $region56: #{tpu_custom_call.1} parent=51 // pred_fallthru
          _
      $region52: #{tpu_custom_call.1} parent=5 // pred_fallthru
        _
      %p427 = scmp.le.s32.totalorder 1, %s27
      %p428 = scmp.lt.s32.totalorder %s27, 5
      %p429 = pnand %p427, %p428
      %p430 = pneg %p429
      // Predicated region
      $region57: #{tpu_custom_call.1} parent=5 // pred_check
        _
      $region58: #{tpu_custom_call.1} parent=5 // pred_check_branch
        %432 = sbr.rel (%p429) target = $region60
      $region59: #{tpu_custom_call.1} parent=5 // pred_region
        %s433 = ssub.s32 %s27, 1
        // Predicated region
        $region61: #{tpu_custom_call.1} parent=59 // pred_check
          %p434 = pneg %p60
        $region62: #{tpu_custom_call.1} parent=59 // pred_check_branch
          %436 = sbr.rel (%p434) target = $region64
        $region63: #{tpu_custom_call.1} parent=59 // pred_region
          %437 = dma.done [#allocation7], 16
        $region64: #{tpu_custom_call.1} parent=59 // pred_fallthru
          _
        // Predicated region
        $region65: #{tpu_custom_call.1} parent=59 // pred_check
          %p438 = pneg %p102
        $region66: #{tpu_custom_call.1} parent=59 // pred_check_branch
          %440 = sbr.rel (%p438) target = $region68
        $region67: #{tpu_custom_call.1} parent=59 // pred_region
          %441 = dma.done [#allocation5], 128
        $region68: #{tpu_custom_call.1} parent=59 // pred_fallthru
          _
        %s442 = sand.u32 %s32, 1
        %s443 = scalar_lea.sflag [#allocation10], %s442
        %s444 = sand.u32 %s117, 1
        %s445 = smul.addr %s444, 256
        %s446 = scalar_lea.vmem [#allocation9], %s445
        // Predicated region
        $region69: #{tpu_custom_call.1} parent=59 // pred_check
          %p447 = pneg %p130
        $region70: #{tpu_custom_call.1} parent=59 // pred_check_branch
          %449 = sbr.rel (%p447) target = $region72
        $region71: #{tpu_custom_call.1} parent=59 // pred_region
          %450 = dma.done %s443, 4096
        $region72: #{tpu_custom_call.1} parent=59 // pred_fallthru
          _
        // Predicated region
        $region73: #{tpu_custom_call.1} parent=59 // pred_check
          %p451 = pneg %p151
        $region74: #{tpu_custom_call.1} parent=59 // pred_check_branch
          %453 = sbr.rel (%p451) target = $region76
        $region75: #{tpu_custom_call.1} parent=59 // pred_region
          %454 = dma.done [#allocation10], 2048
        $region76: #{tpu_custom_call.1} parent=59 // pred_fallthru
          _
        // Predicated region
        $region77: #{tpu_custom_call.1} parent=59 // pred_check
          %p455 = pneg %p172
        $region78: #{tpu_custom_call.1} parent=59 // pred_check_branch
          %457 = sbr.rel (%p455) target = $region80
        $region79: #{tpu_custom_call.1} parent=59 // pred_region
          %458 = dma.done [#allocation13], 2048
        $region80: #{tpu_custom_call.1} parent=59 // pred_fallthru
          _
        // Predicated region
        $region81: #{tpu_custom_call.1} parent=59 // pred_check
          %p459 = pneg %p193
        $region82: #{tpu_custom_call.1} parent=59 // pred_check_branch
          %461 = sbr.rel (%p459) target = $region84
        $region83: #{tpu_custom_call.1} parent=59 // pred_region
          %462 = dma.done [#allocation13], 2048
        $region84: #{tpu_custom_call.1} parent=59 // pred_fallthru
          _
        // Predicated region
        $region85: #{tpu_custom_call.1} parent=59 // pred_check
          %p463 = pneg %p214
        $region86: #{tpu_custom_call.1} parent=59 // pred_check_branch
          %465 = sbr.rel (%p463) target = $region88
        $region87: #{tpu_custom_call.1} parent=59 // pred_region
          %466 = dma.done [#allocation16], 2048
        $region88: #{tpu_custom_call.1} parent=59 // pred_fallthru
          _
        // Predicated region
        $region89: #{tpu_custom_call.1} parent=59 // pred_check
          %p467 = pneg %p235
        $region90: #{tpu_custom_call.1} parent=59 // pred_check_branch
          %469 = sbr.rel (%p467) target = $region92
        $region91: #{tpu_custom_call.1} parent=59 // pred_region
          %470 = dma.done [#allocation16], 512
        $region92: #{tpu_custom_call.1} parent=59 // pred_fallthru
          _
        // Predicated region
        $region93: #{tpu_custom_call.1} parent=59 // pred_check
          %p471 = pneg %p256
        $region94: #{tpu_custom_call.1} parent=59 // pred_check_branch
          %473 = sbr.rel (%p471) target = $region96
        $region95: #{tpu_custom_call.1} parent=59 // pred_region
          %474 = dma.done [#allocation19], 512
        $region96: #{tpu_custom_call.1} parent=59 // pred_fallthru
          _
        %475 = sfence
        %p476 = pneg %p60
        %p477 = pneg %p57
        %p478 = pneg %p81
        %p479 = pneg %p78
        %p480 = pneg %p102
        %p481 = pneg %p99
        %s482 = sand.u32 %s32, 1
        %s483 = scalar_lea.sflag [#allocation10], %s482
        %s484 = sand.u32 %s117, 1
        %s485 = smul.addr %s484, 256
        %s486 = scalar_lea.vmem [#allocation9], %s485
        %p487 = pneg %p130
        %p488 = pneg %p127
        %p489 = pneg %p151
        %p490 = pneg %p148
        %p491 = pneg %p172
        %p492 = pneg %p169
        %p493 = pneg %p193
        %p494 = pneg %p190
        %p495 = pneg %p214
        %p496 = pneg %p211
        %p497 = pneg %p235
        %p498 = pneg %p232
        %p499 = pneg %p256
        %p500 = pneg %p253
        %p501 = pneg %p284
        %p502 = pneg %p281
        %s503 = sand.u32 %s271, 1
        %s504 = scalar_lea.sflag [#allocation6], %s503
        %s505 = sand.u32 %s271, 1
        %s506 = smul.addr %s505, 256
        %s507 = scalar_lea.vmem [#allocation20], %s506
        %s508 = smul.u32 32, %s37
        %s509 = smul.u32 32, %s37
        %p510 = scmp.eq.s32.totalorder %s37, 0
        // Predicated region
        $region97: #{tpu_custom_call.1} parent=59 // pred_check
          %p511 = pneg %p510
        $region98: #{tpu_custom_call.1} parent=59 // pred_check_branch
          %513 = sbr.rel (%p511) target = $region100
        $region99: #{tpu_custom_call.1} parent=59 // pred_region
          %s514 = sld [smem:[#allocation4 + %s36]]
          %v515 = vld [vmem:[%s1] sm:$0x1]
          %v516 = vstv %s514
          %v517 = vmul.f32 %v516, %v515
          %v518 = vand.u32 2147483647, %v517
          %vm519 = vcmp.le.f32.partialorder %v518, 0.7853982
          %vm520 = vcmp.lt.s32.totalorder %v517, 0
          %v521 = vand.u32 %v517, 2139095040
          %v522 = vshrl.u32 %v521, 23
          %v523 = vsub.s32 %v522, 127
          %v524 = vand.u32 2147483647, %v517
          %v525 = vand.u32 %v524, 8388607
          %v526 = vor.u32 %v525, 8388608
          %v527 = vsub.s32 0, %v526
          %v528 = vadd.s32 %v523, 1
          %vm529 = vcmp.gt.s32.totalorder %v528, 0
          %v530 = vsel %vm529, %v528, 0
          %v531 = vshrl.u32 %v530, 5
          %v532 = vand.u32 %v530, 31
          %v533 = vsub.s32 32, %v532
          %v534 = vshrl.u32 683565275, %v533
          %v535 = vshll.u32 683565275, %v532
          %v536 = vshrl.u32 2475754826, %v533
          %v537 = vor.u32 %v535, %v536
          %v538 = vshll.u32 2475754826, %v532
          %v539 = vshrl.u32 2131351028, %v533
          %v540 = vor.u32 %v538, %v539
          %v541 = vshll.u32 2131351028, %v532
          %v542 = vshrl.u32 2102212464, %v533
          %v543 = vor.u32 %v541, %v542
          %v544 = vshll.u32 2102212464, %v532
          %v545 = vshrl.u32 920167782, %v533
          %v546 = vor.u32 %v544, %v545
          %v547 = vshll.u32 920167782, %v532
          %v548 = vshrl.u32 1326507024, %v533
          %v549 = vor.u32 %v547, %v548
          %vm550 = vcmp.lt.s32.totalorder %v531, 1
          %vm551 = vcmp.lt.s32.totalorder %v531, 2
          %vm552 = vcmp.lt.s32.totalorder %v531, 3
          %vm553 = vcmp.lt.s32.totalorder %v531, 4
          %v554 = vsel %vm550, %v534, %v537
          %v555 = vsel %vm553, %v543, 2102212464
          %v556 = vsel %vm552, %v540, %v555
          %v557 = vsel %vm551, %v554, %v556
          %v558 = vsel %vm550, %v537, %v540
          %v559 = vsel %vm553, %v546, 920167782
          %v560 = vsel %vm552, %v543, %v559
          %v561 = vsel %vm551, %v558, %v560
          %v562 = vsel %vm550, %v540, %v543
          %v563 = vsel %vm553, %v549, 1326507024
          %v564 = vsel %vm552, %v546, %v563
          %v565 = vsel %vm551, %v562, %v564
          %v566 = vshll.u32 %v526, 8
          %v567 = vmul.u32.u64.compose %v566, %v565
          %v568 = vextract.low.u32 %v567
          %v569 = vextract.high.u32 %v567
          %v570 = vmul.u32.u64.compose %v566, %v561
          %v571 = vextract.low.u32 %v570
          %v572 = vextract.high.u32 %v570
          %v573 = vmul.u32 %v566, %v557
          %v574 = vadd.s32 %v569, %v571
          %vm575 = vc.u32 %v569, %v571
          %v576 = vadd.s32 %v572, 1
          %v577 = vsel %vm575, %v576, %v572
          %v578 = vadd.s32 %v573, %v577
          %v579 = vadd.s32 %v578, 536870912
          %v580 = vshrl.u32 %v579, 30
          %v581 = vshll.u32 %v580, 30
          %v582 = vsub.s32 %v578, %v581
          %vm583 = vcmp.lt.s32.totalorder %v582, 0
          %v584 = vsub.s32 0, %v582
          %v585 = vsel %vm583, %v584, %v582
          %v586 = vclz %v585
          %v587 = vsub.s32 %v586, 2
          %vm588 = vcmp.gt.s32.totalorder 0, %v587
          %v589 = vsel %vm588, 0, %v587
          %v590 = vsub.s32 32, %v589
          %v591 = vshll.u32 %v582, %v589
          %v592 = vshrl.u32 %v574, %v590
          %v593 = vor.u32 %v591, %v592
          %v594 = vsub.s32 4294967266, %v589
          %v595 = vadd.s32 %v594, 127
          %v596 = vshll.u32 %v595, 23
          %v597 = vor.u32 4788187, %v596
          %v598 = vand.u32 2147483647, %v597
          %v600 = vcvt.s32.f32 %v593
          %v601 = vmul.f32 %v600, %v598
          %v602 = vxor.u32 %v601, 2147483648
          %v603 = vsel %vm520, %v602, %v601
          %v604 = vsub.s32 4, %v580
          %v605 = vsel %vm520, %v604, %v580
          %v606 = vsel %vm519, %v517, %v603
          %v607 = vsel %vm519, 0, %v605
          %v608 = vcosq.f32.pop %v606
          %v609 = vsinq.f32.pop %v606
          %vm610 = vweird.f32 %v517
          %v611 = vadd.s32 %v607, 3
          %v612 = vand.u32 %v611, 3
          %vm613 = vcmp.lt.s32.totalorder %v612, 2
          %vm614 = vcmp.eq.s32.totalorder %v612, 0
          %v615 = vxor.u32 %v609, 2147483648
          %v616 = vsel %vm614, %v608, %v615
          %vm617 = vcmp.eq.s32.totalorder %v612, 2
          %v618 = vxor.u32 %v608, 2147483648
          %v619 = vsel %vm617, %v618, %v609
          %v620 = vsel %vm613, %v616, %v619
          %v621 = vsel %vm610, nan, %v620
          %v622 = vld [vmem:[#allocation17] sm:$0xff]
          %v623 = vld [vmem:[#allocation17 + $0x8] sm:$0xff]
          %v624 = vld [vmem:[#allocation17 + $0x10] sm:$0xff]
          %v625 = vld [vmem:[#allocation17 + $0x18] sm:$0xff]
          %v626 = vand.u32 2147483647, %v517
          %vm627 = vcmp.le.f32.partialorder %v626, 0.7853982
          %vm628 = vcmp.lt.s32.totalorder %v517, 0
          %v629 = vand.u32 %v517, 2139095040
          %v630 = vshrl.u32 %v629, 23
          %v631 = vsub.s32 %v630, 127
          %v632 = vand.u32 2147483647, %v517
          %v633 = vand.u32 %v632, 8388607
          %v634 = vor.u32 %v633, 8388608
          %v635 = vsub.s32 0, %v634
          %v636 = vadd.s32 %v631, 1
          %vm637 = vcmp.gt.s32.totalorder %v636, 0
          %v638 = vsel %vm637, %v636, 0
          %v639 = vshrl.u32 %v638, 5
          %v640 = vand.u32 %v638, 31
          %v641 = vsub.s32 32, %v640
          %v642 = vshrl.u32 683565275, %v641
          %v643 = vshll.u32 683565275, %v640
          %v644 = vshrl.u32 2475754826, %v641
          %v645 = vor.u32 %v643, %v644
          %v646 = vshll.u32 2475754826, %v640
          %v647 = vshrl.u32 2131351028, %v641
          %v648 = vor.u32 %v646, %v647
          %v649 = vshll.u32 2131351028, %v640
          %v650 = vshrl.u32 2102212464, %v641
          %v651 = vor.u32 %v649, %v650
          %v652 = vshll.u32 2102212464, %v640
          %v653 = vshrl.u32 920167782, %v641
          %v654 = vor.u32 %v652, %v653
          %v655 = vshll.u32 920167782, %v640
          %v656 = vshrl.u32 1326507024, %v641
          %v657 = vor.u32 %v655, %v656
          %vm658 = vcmp.lt.s32.totalorder %v639, 1
          %vm659 = vcmp.lt.s32.totalorder %v639, 2
          %vm660 = vcmp.lt.s32.totalorder %v639, 3
          %vm661 = vcmp.lt.s32.totalorder %v639, 4
          %v662 = vsel %vm658, %v642, %v645
          %v663 = vsel %vm661, %v651, 2102212464
          %v664 = vsel %vm660, %v648, %v663
          %v665 = vsel %vm659, %v662, %v664
          %v666 = vsel %vm658, %v645, %v648
          %v667 = vsel %vm661, %v654, 920167782
          %v668 = vsel %vm660, %v651, %v667
          %v669 = vsel %vm659, %v666, %v668
          %v670 = vsel %vm658, %v648, %v651
          %v671 = vsel %vm661, %v657, 1326507024
          %v672 = vsel %vm660, %v654, %v671
          %v673 = vsel %vm659, %v670, %v672
          %v674 = vshll.u32 %v634, 8
          %v675 = vmul.u32.u64.compose %v674, %v673
          %v676 = vextract.low.u32 %v675
          %v677 = vextract.high.u32 %v675
          %v678 = vmul.u32.u64.compose %v674, %v669
          %v679 = vextract.low.u32 %v678
          %v680 = vextract.high.u32 %v678
          %v681 = vmul.u32 %v674, %v665
          %v682 = vadd.s32 %v677, %v679
          %vm683 = vc.u32 %v677, %v679
          %v684 = vadd.s32 %v680, 1
          %v685 = vsel %vm683, %v684, %v680
          %v686 = vadd.s32 %v681, %v685
          %v687 = vadd.s32 %v686, 536870912
          %v688 = vshrl.u32 %v687, 30
          %v689 = vshll.u32 %v688, 30
          %v690 = vsub.s32 %v686, %v689
          %vm691 = vcmp.lt.s32.totalorder %v690, 0
          %v692 = vsub.s32 0, %v690
          %v693 = vsel %vm691, %v692, %v690
          %v694 = vclz %v693
          %v695 = vsub.s32 %v694, 2
          %vm696 = vcmp.gt.s32.totalorder 0, %v695
          %v697 = vsel %vm696, 0, %v695
          %v698 = vsub.s32 32, %v697
          %v699 = vshll.u32 %v690, %v697
          %v700 = vshrl.u32 %v682, %v698
          %v701 = vor.u32 %v699, %v700
          %v702 = vsub.s32 4294967266, %v697
          %v703 = vadd.s32 %v702, 127
          %v704 = vshll.u32 %v703, 23
          %v705 = vor.u32 4788187, %v704
          %v706 = vand.u32 2147483647, %v705
          %v708 = vcvt.s32.f32 %v701
          %v709 = vmul.f32 %v708, %v706
          %v710 = vxor.u32 %v709, 2147483648
          %v711 = vsel %vm628, %v710, %v709
          %v712 = vsub.s32 4, %v688
          %v713 = vsel %vm628, %v712, %v688
          %v714 = vsel %vm627, %v517, %v711
          %v715 = vsel %vm627, 0, %v713
          %v716 = vcosq.f32.pop %v714
          %v717 = vsinq.f32.pop %v714
          %vm718 = vweird.f32 %v517
          %v719 = vand.u32 %v715, 3
          %vm720 = vcmp.lt.s32.totalorder %v719, 2
          %vm721 = vcmp.eq.s32.totalorder %v719, 0
          %v722 = vxor.u32 %v717, 2147483648
          %v723 = vsel %vm721, %v716, %v722
          %vm724 = vcmp.eq.s32.totalorder %v719, 2
          %v725 = vxor.u32 %v716, 2147483648
          %v726 = vsel %vm724, %v725, %v717
          %v727 = vsel %vm720, %v723, %v726
          %v728 = vsel %vm718, nan, %v727
          %v729 = vld [vmem:[#allocation18] sm:$0xff]
          %v730 = vld [vmem:[#allocation18 + $0x8] sm:$0xff]
          %v731 = vld [vmem:[#allocation18 + $0x10] sm:$0xff]
          %v732 = vld [vmem:[#allocation18 + $0x18] sm:$0xff]
          %vm733 = vcmask 261120
          %v735 = vsel %vm733, %v728, 0
          %737 = vmatprep.subr.mxu0 0.0
          %738 = vmatpush1.msra.mxu0 0.0
          %739 = vmatprep.subr.mxu0 0.0
          %740 = vmatpush1.msra.mxu0 0.0
          %741 = vmatprep.subr.mxu0 0.0
          %742 = vmatpush1.msra.mxu0 0.0
          %743 = vmatprep.subr.mxu0 0.0
          %744 = vmatpush1.msra.mxu0 0.0
          %745 = vmatprep.subr.mxu0 0.0
          %746 = vmatpush1.msra.mxu0 0.0
          %747 = vmatprep.subr.mxu0 0.0
          %748 = vmatpush1.msra.mxu0 0.0
          %749 = vmatprep.subr.mxu0 0.0
          %750 = vmatpush1.msra.mxu0 0.0
          %751 = vmatprep.subr.mxu0 0.0
          %752 = vmatpush1.msra.mxu0 0.0
          %753 = vmatprep.subr.mxu0 0.0
          %754 = vmatpush1.msra.mxu0 0.0
          %755 = vmatprep.subr.mxu0 0.0
          %756 = vmatpush1.msra.mxu0 0.0
          %757 = vmatprep.subr.mxu0 0.0
          %758 = vmatpush1.msra.mxu0 0.0
          %759 = vmatprep.subr.mxu0 0.0
          %760 = vmatpush1.msra.mxu0 0.0
          %761 = vmatprep.subr.mxu0 0.0
          %762 = vmatpush1.msra.mxu0 %v732
          %763 = vmatprep.subr.mxu0 0.0
          %764 = vmatpush1.msra.mxu0 %v731
          %765 = vmatprep.subr.mxu0 0.0
          %766 = vmatpush1.msra.mxu0 %v730
          %767 = vmatprep.subr.mxu0 0.0
          %768 = vmatpush1.msra.mxu0 %v729
          %769 = vmatprep.subr.mxu0 0.0
          %770 = vmatpush2.msra.mxu0 0.0
          %771 = vmatprep.subr.mxu0 0.0
          %772 = vmatpush2.msra.mxu0 0.0
          %773 = vmatprep.subr.mxu0 0.0
          %774 = vmatpush2.msra.mxu0 0.0
          %775 = vmatprep.subr.mxu0 0.0
          %776 = vmatpush2.msra.mxu0 0.0
          %777 = vmatprep.subr.mxu0 0.0
          %778 = vmatpush2.msra.mxu0 0.0
          %779 = vmatprep.subr.mxu0 0.0
          %780 = vmatpush2.msra.mxu0 0.0
          %781 = vmatprep.subr.mxu0 0.0
          %782 = vmatpush2.msra.mxu0 0.0
          %783 = vmatprep.subr.mxu0 0.0
          %784 = vmatpush2.msra.mxu0 0.0
          %785 = vmatprep.subr.mxu0 0.0
          %786 = vmatpush2.msra.mxu0 0.0
          %787 = vmatprep.subr.mxu0 0.0
          %788 = vmatpush2.msra.mxu0 0.0
          %789 = vmatprep.subr.mxu0 0.0
          %790 = vmatpush2.msra.mxu0 0.0
          %791 = vmatprep.subr.mxu0 0.0
          %792 = vmatpush2.msra.mxu0 0.0
          %793 = vmatprep.subr.mxu0 0.0
          %794 = vmatpush2.msra.mxu0 0.0
          %795 = vmatprep.subr.mxu0 0.0
          %796 = vmatpush2.msra.mxu0 0.0
          %797 = vmatprep.subr.mxu0 0.0
          %798 = vmatpush2.msra.mxu0 0.0
          %799 = vmatprep.subr.mxu0 0.0
          %800 = vmatpush2.msra.mxu0 0.0
          %801 = vmatprep.mubr.f32.mxu0 0.0
          %802 = vmatmul.mubr.f32.gmra.mxu0 %v735
          %v803 = vpop.f32.mrf.mxu0
          %v804 = vadd.f32 0.0, %v803
          %v805 = vpop.f32.mrf.mxu0
          %806 = vdwg.mxu0
          %v808 = vsel %vm733, %v621, 0
          %810 = vmatprep.subr.mxu0 0.0
          %811 = vmatpush1.msra.mxu0 0.0
          %812 = vmatprep.subr.mxu0 0.0
          %813 = vmatpush1.msra.mxu0 0.0
          %814 = vmatprep.subr.mxu0 0.0
          %815 = vmatpush1.msra.mxu0 0.0
          %816 = vmatprep.subr.mxu0 0.0
          %817 = vmatpush1.msra.mxu0 0.0
          %818 = vmatprep.subr.mxu0 0.0
          %819 = vmatpush1.msra.mxu0 0.0
          %820 = vmatprep.subr.mxu0 0.0
          %821 = vmatpush1.msra.mxu0 0.0
          %822 = vmatprep.subr.mxu0 0.0
          %823 = vmatpush1.msra.mxu0 0.0
          %824 = vmatprep.subr.mxu0 0.0
          %825 = vmatpush1.msra.mxu0 0.0
          %826 = vmatprep.subr.mxu0 0.0
          %827 = vmatpush1.msra.mxu0 0.0
          %828 = vmatprep.subr.mxu0 0.0
          %829 = vmatpush1.msra.mxu0 0.0
          %830 = vmatprep.subr.mxu0 0.0
          %831 = vmatpush1.msra.mxu0 0.0
          %832 = vmatprep.subr.mxu0 0.0
          %833 = vmatpush1.msra.mxu0 0.0
          %834 = vmatprep.subr.mxu0 0.0
          %835 = vmatpush1.msra.mxu0 %v625
          %836 = vmatprep.subr.mxu0 0.0
          %837 = vmatpush1.msra.mxu0 %v624
          %838 = vmatprep.subr.mxu0 0.0
          %839 = vmatpush1.msra.mxu0 %v623
          %840 = vmatprep.subr.mxu0 0.0
          %841 = vmatpush1.msra.mxu0 %v622
          %842 = vmatprep.subr.mxu0 0.0
          %843 = vmatpush2.msra.mxu0 0.0
          %844 = vmatprep.subr.mxu0 0.0
          %845 = vmatpush2.msra.mxu0 0.0
          %846 = vmatprep.subr.mxu0 0.0
          %847 = vmatpush2.msra.mxu0 0.0
          %848 = vmatprep.subr.mxu0 0.0
          %849 = vmatpush2.msra.mxu0 0.0
          %850 = vmatprep.subr.mxu0 0.0
          %851 = vmatpush2.msra.mxu0 0.0
          %852 = vmatprep.subr.mxu0 0.0
          %853 = vmatpush2.msra.mxu0 0.0
          %854 = vmatprep.subr.mxu0 0.0
          %855 = vmatpush2.msra.mxu0 0.0
          %856 = vmatprep.subr.mxu0 0.0
          %857 = vmatpush2.msra.mxu0 0.0
          %858 = vmatprep.subr.mxu0 0.0
          %859 = vmatpush2.msra.mxu0 0.0
          %860 = vmatprep.subr.mxu0 0.0
          %861 = vmatpush2.msra.mxu0 0.0
          %862 = vmatprep.subr.mxu0 0.0
          %863 = vmatpush2.msra.mxu0 0.0
          %864 = vmatprep.subr.mxu0 0.0
          %865 = vmatpush2.msra.mxu0 0.0
          %866 = vmatprep.subr.mxu0 0.0
          %867 = vmatpush2.msra.mxu0 0.0
          %868 = vmatprep.subr.mxu0 0.0
          %869 = vmatpush2.msra.mxu0 0.0
          %870 = vmatprep.subr.mxu0 0.0
          %871 = vmatpush2.msra.mxu0 0.0
          %872 = vmatprep.subr.mxu0 0.0
          %873 = vmatpush2.msra.mxu0 0.0
          %874 = vmatprep.mubr.f32.mxu0 0.0
          %875 = vmatmul.mubr.f32.gmra.mxu0 %v808
          %v876 = vpop.f32.mrf.mxu0
          %v877 = vadd.f32 %v804, %v876
          %v878 = vpop.f32.mrf.mxu0
          %879 = vdwg.mxu0
          %v880 = vld [vmem:[#allocation8 + $0x4] sm:$0x1]
          %v881 = vadd.f32 %v877, %v880
          %v882 = vld [vmem:[#allocation12] sm:$0xff]
          %v883 = vld [vmem:[#allocation12 + $0x8] sm:$0xff]
          %v884 = vld [vmem:[#allocation12 + $0x10] sm:$0xff]
          %v885 = vld [vmem:[#allocation12 + $0x18] sm:$0xff]
          %v886 = vld [vmem:[#allocation12 + $0x20] sm:$0xff]
          %v887 = vld [vmem:[#allocation12 + $0x28] sm:$0xff]
          %v888 = vld [vmem:[#allocation12 + $0x30] sm:$0xff]
          %v889 = vld [vmem:[#allocation12 + $0x38] sm:$0xff]
          %v890 = vld [vmem:[#allocation12 + $0x40] sm:$0xff]
          %v891 = vld [vmem:[#allocation12 + $0x48] sm:$0xff]
          %v892 = vld [vmem:[#allocation12 + $0x50] sm:$0xff]
          %v893 = vld [vmem:[#allocation12 + $0x58] sm:$0xff]
          %v894 = vld [vmem:[#allocation12 + $0x60] sm:$0xff]
          %v895 = vld [vmem:[#allocation12 + $0x68] sm:$0xff]
          %v896 = vld [vmem:[#allocation12 + $0x70] sm:$0xff]
          %v897 = vld [vmem:[#allocation12 + $0x78] sm:$0xff]
          %v898 = vlaneseq
          %v899 = vshrl.u32 %v898, 7
          %v900 = vsub.s32 0, %v899
          %v901 = vrot.slane %v881, %v900
          %v902 = vmul.f32 %v882, %v901
          %v903 = vmul.f32 %v883, %v901
          %v904 = vmul.f32 %v884, %v901
          %v905 = vmul.f32 %v885, %v901
          %v906 = vmul.f32 %v886, %v901
          %v907 = vmul.f32 %v887, %v901
          %v908 = vmul.f32 %v888, %v901
          %v909 = vmul.f32 %v889, %v901
          %v910 = vmul.f32 %v890, %v901
          %v911 = vmul.f32 %v891, %v901
          %v912 = vmul.f32 %v892, %v901
          %v913 = vmul.f32 %v893, %v901
          %v914 = vmul.f32 %v894, %v901
          %v915 = vmul.f32 %v895, %v901
          %v916 = vmul.f32 %v896, %v901
          %v917 = vmul.f32 %v897, %v901
          %v918 = vld [vmem:[#allocation14] sm:$0xff]
          %v919 = vld [vmem:[#allocation14 + $0x8] sm:$0xff]
          %v920 = vld [vmem:[#allocation14 + $0x10] sm:$0xff]
          %v921 = vld [vmem:[#allocation14 + $0x18] sm:$0xff]
          %v922 = vld [vmem:[#allocation14 + $0x20] sm:$0xff]
          %v923 = vld [vmem:[#allocation14 + $0x28] sm:$0xff]
          %v924 = vld [vmem:[#allocation14 + $0x30] sm:$0xff]
          %v925 = vld [vmem:[#allocation14 + $0x38] sm:$0xff]
          %v926 = vld [vmem:[#allocation14 + $0x40] sm:$0xff]
          %v927 = vld [vmem:[#allocation14 + $0x48] sm:$0xff]
          %v928 = vld [vmem:[#allocation14 + $0x50] sm:$0xff]
          %v929 = vld [vmem:[#allocation14 + $0x58] sm:$0xff]
          %v930 = vld [vmem:[#allocation14 + $0x60] sm:$0xff]
          %v931 = vld [vmem:[#allocation14 + $0x68] sm:$0xff]
          %v932 = vld [vmem:[#allocation14 + $0x70] sm:$0xff]
          %v933 = vld [vmem:[#allocation14 + $0x78] sm:$0xff]
          %934 = vmatprep.subr.mxu0 0.0
          %935 = vmatpush1.msra.mxu0 %v933
          %936 = vmatprep.subr.mxu0 0.0
          %937 = vmatpush1.msra.mxu0 %v932
          %938 = vmatprep.subr.mxu0 0.0
          %939 = vmatpush1.msra.mxu0 %v931
          %940 = vmatprep.subr.mxu0 0.0
          %941 = vmatpush1.msra.mxu0 %v930
          %942 = vmatprep.subr.mxu0 0.0
          %943 = vmatpush1.msra.mxu0 %v929
          %944 = vmatprep.subr.mxu0 0.0
          %945 = vmatpush1.msra.mxu0 %v928
          %946 = vmatprep.subr.mxu0 0.0
          %947 = vmatpush1.msra.mxu0 %v927
          %948 = vmatprep.subr.mxu0 0.0
          %949 = vmatpush1.msra.mxu0 %v926
          %950 = vmatprep.subr.mxu0 0.0
          %951 = vmatpush1.msra.mxu0 %v925
          %952 = vmatprep.subr.mxu0 0.0
          %953 = vmatpush1.msra.mxu0 %v924
          %954 = vmatprep.subr.mxu0 0.0
          %955 = vmatpush1.msra.mxu0 %v923
          %956 = vmatprep.subr.mxu0 0.0
          %957 = vmatpush1.msra.mxu0 %v922
          %958 = vmatprep.subr.mxu0 0.0
          %959 = vmatpush1.msra.mxu0 %v921
          %960 = vmatprep.subr.mxu0 0.0
          %961 = vmatpush1.msra.mxu0 %v920
          %962 = vmatprep.subr.mxu0 0.0
          %963 = vmatpush1.msra.mxu0 %v919
          %964 = vmatprep.subr.mxu0 0.0
          %965 = vmatpush1.msra.mxu0 %v918
          %966 = vmatprep.subr.mxu0 0.0
          %967 = vmatpush2.msra.mxu0 0.0
          %968 = vmatprep.subr.mxu0 0.0
          %969 = vmatpush2.msra.mxu0 0.0
          %970 = vmatprep.subr.mxu0 0.0
          %971 = vmatpush2.msra.mxu0 0.0
          %972 = vmatprep.subr.mxu0 0.0
          %973 = vmatpush2.msra.mxu0 0.0
          %974 = vmatprep.subr.mxu0 0.0
          %975 = vmatpush2.msra.mxu0 0.0
          %976 = vmatprep.subr.mxu0 0.0
          %977 = vmatpush2.msra.mxu0 0.0
          %978 = vmatprep.subr.mxu0 0.0
          %979 = vmatpush2.msra.mxu0 0.0
          %980 = vmatprep.subr.mxu0 0.0
          %981 = vmatpush2.msra.mxu0 0.0
          %982 = vmatprep.subr.mxu0 0.0
          %983 = vmatpush2.msra.mxu0 0.0
          %984 = vmatprep.subr.mxu0 0.0
          %985 = vmatpush2.msra.mxu0 0.0
          %986 = vmatprep.subr.mxu0 0.0
          %987 = vmatpush2.msra.mxu0 0.0
          %988 = vmatprep.subr.mxu0 0.0
          %989 = vmatpush2.msra.mxu0 0.0
          %990 = vmatprep.subr.mxu0 0.0
          %991 = vmatpush2.msra.mxu0 0.0
          %992 = vmatprep.subr.mxu0 0.0
          %993 = vmatpush2.msra.mxu0 0.0
          %994 = vmatprep.subr.mxu0 0.0
          %995 = vmatpush2.msra.mxu0 0.0
          %996 = vmatprep.subr.mxu0 0.0
          %997 = vmatpush2.msra.mxu0 0.0
          %998 = vmatprep.mubr.f32.mxu0 0.0
          %999 = vmatmul.mubr.f32.gmra.mxu0 %v902
          %v1000 = vpop.f32.mrf.mxu0
          %v1001 = vadd.f32 0.0, %v1000
          %v1002 = vpop.f32.mrf.mxu0
          %1003 = vmatprep.mubr.f32.mxu0 0.0
          %1004 = vmatmul.mubr.f32.gmra.mxu0 %v903
          %v1005 = vpop.f32.mrf.mxu0
          %v1006 = vadd.f32 0.0, %v1005
          %v1007 = vpop.f32.mrf.mxu0
          %1008 = vmatprep.mubr.f32.mxu0 0.0
          %1009 = vmatmul.mubr.f32.gmra.mxu0 %v904
          %v1010 = vpop.f32.mrf.mxu0
          %v1011 = vadd.f32 0.0, %v1010
          %v1012 = vpop.f32.mrf.mxu0
          %1013 = vmatprep.mubr.f32.mxu0 0.0
          %1014 = vmatmul.mubr.f32.gmra.mxu0 %v905
          %v1015 = vpop.f32.mrf.mxu0
          %v1016 = vadd.f32 0.0, %v1015
          %v1017 = vpop.f32.mrf.mxu0
          %1018 = vmatprep.mubr.f32.mxu0 0.0
          %1019 = vmatmul.mubr.f32.gmra.mxu0 %v906
          %v1020 = vpop.f32.mrf.mxu0
          %v1021 = vadd.f32 0.0, %v1020
          %v1022 = vpop.f32.mrf.mxu0
          %1023 = vmatprep.mubr.f32.mxu0 0.0
          %1024 = vmatmul.mubr.f32.gmra.mxu0 %v907
          %v1025 = vpop.f32.mrf.mxu0
          %v1026 = vadd.f32 0.0, %v1025
          %v1027 = vpop.f32.mrf.mxu0
          %1028 = vmatprep.mubr.f32.mxu0 0.0
          %1029 = vmatmul.mubr.f32.gmra.mxu0 %v908
          %v1030 = vpop.f32.mrf.mxu0
          %v1031 = vadd.f32 0.0, %v1030
          %v1032 = vpop.f32.mrf.mxu0
          %1033 = vmatprep.mubr.f32.mxu0 0.0
          %1034 = vmatmul.mubr.f32.gmra.mxu0 %v909
          %v1035 = vpop.f32.mrf.mxu0
          %v1036 = vadd.f32 0.0, %v1035
          %v1037 = vpop.f32.mrf.mxu0
          %1038 = vmatprep.mubr.f32.mxu0 0.0
          %1039 = vmatmul.mubr.f32.gmra.mxu0 %v910
          %v1040 = vpop.f32.mrf.mxu0
          %v1041 = vadd.f32 0.0, %v1040
          %v1042 = vpop.f32.mrf.mxu0
          %1043 = vmatprep.mubr.f32.mxu0 0.0
          %1044 = vmatmul.mubr.f32.gmra.mxu0 %v911
          %v1045 = vpop.f32.mrf.mxu0
          %v1046 = vadd.f32 0.0, %v1045
          %v1047 = vpop.f32.mrf.mxu0
          %1048 = vmatprep.mubr.f32.mxu0 0.0
          %1049 = vmatmul.mubr.f32.gmra.mxu0 %v912
          %v1050 = vpop.f32.mrf.mxu0
          %v1051 = vadd.f32 0.0, %v1050
          %v1052 = vpop.f32.mrf.mxu0
          %1053 = vmatprep.mubr.f32.mxu0 0.0
          %1054 = vmatmul.mubr.f32.gmra.mxu0 %v913
          %v1055 = vpop.f32.mrf.mxu0
          %v1056 = vadd.f32 0.0, %v1055
          %v1057 = vpop.f32.mrf.mxu0
          %1058 = vmatprep.mubr.f32.mxu0 0.0
          %1059 = vmatmul.mubr.f32.gmra.mxu0 %v914
          %v1060 = vpop.f32.mrf.mxu0
          %v1061 = vadd.f32 0.0, %v1060
          %v1062 = vpop.f32.mrf.mxu0
          %1063 = vmatprep.mubr.f32.mxu0 0.0
          %1064 = vmatmul.mubr.f32.gmra.mxu0 %v915
          %v1065 = vpop.f32.mrf.mxu0
          %v1066 = vadd.f32 0.0, %v1065
          %v1067 = vpop.f32.mrf.mxu0
          %1068 = vmatprep.mubr.f32.mxu0 0.0
          %1069 = vmatmul.mubr.f32.gmra.mxu0 %v916
          %v1070 = vpop.f32.mrf.mxu0
          %v1071 = vadd.f32 0.0, %v1070
          %v1072 = vpop.f32.mrf.mxu0
          %1073 = vmatprep.mubr.f32.mxu0 0.0
          %1074 = vmatmul.mubr.f32.gmra.mxu0 %v917
          %v1075 = vpop.f32.mrf.mxu0
          %v1076 = vadd.f32 0.0, %v1075
          %v1077 = vpop.f32.mrf.mxu0
          %1078 = vdwg.mxu0
          %1079 = vst [vmem:[#allocation2] sm:$0xff] %v1001
          %1080 = vst [vmem:[#allocation2 + $0x8] sm:$0xff] %v1006
          %1081 = vst [vmem:[#allocation2 + $0x10] sm:$0xff] %v1011
          %1082 = vst [vmem:[#allocation2 + $0x18] sm:$0xff] %v1016
          %1083 = vst [vmem:[#allocation2 + $0x20] sm:$0xff] %v1021
          %1084 = vst [vmem:[#allocation2 + $0x28] sm:$0xff] %v1026
          %1085 = vst [vmem:[#allocation2 + $0x30] sm:$0xff] %v1031
          %1086 = vst [vmem:[#allocation2 + $0x38] sm:$0xff] %v1036
          %1087 = vst [vmem:[#allocation2 + $0x40] sm:$0xff] %v1041
          %1088 = vst [vmem:[#allocation2 + $0x48] sm:$0xff] %v1046
          %1089 = vst [vmem:[#allocation2 + $0x50] sm:$0xff] %v1051
          %1090 = vst [vmem:[#allocation2 + $0x58] sm:$0xff] %v1056
          %1091 = vst [vmem:[#allocation2 + $0x60] sm:$0xff] %v1061
          %1092 = vst [vmem:[#allocation2 + $0x68] sm:$0xff] %v1066
          %1093 = vst [vmem:[#allocation2 + $0x70] sm:$0xff] %v1071
          %1094 = vst [vmem:[#allocation2 + $0x78] sm:$0xff] %v1076
          %v1095 = vld [vmem:[#allocation8 + $0x1] sm:$0x1]
          %v1096 = vmul.f32 %v1095, %v881
          %v1097 = vld [vmem:[#allocation14] sm:$0xff]
          %v1098 = vld [vmem:[#allocation14 + $0x8] sm:$0xff]
          %v1099 = vld [vmem:[#allocation14 + $0x10] sm:$0xff]
          %v1100 = vld [vmem:[#allocation14 + $0x18] sm:$0xff]
          %v1101 = vld [vmem:[#allocation14 + $0x20] sm:$0xff]
          %v1102 = vld [vmem:[#allocation14 + $0x28] sm:$0xff]
          %v1103 = vld [vmem:[#allocation14 + $0x30] sm:$0xff]
          %v1104 = vld [vmem:[#allocation14 + $0x38] sm:$0xff]
          %v1105 = vld [vmem:[#allocation14 + $0x40] sm:$0xff]
          %v1106 = vld [vmem:[#allocation14 + $0x48] sm:$0xff]
          %v1107 = vld [vmem:[#allocation14 + $0x50] sm:$0xff]
          %v1108 = vld [vmem:[#allocation14 + $0x58] sm:$0xff]
          %v1109 = vld [vmem:[#allocation14 + $0x60] sm:$0xff]
          %v1110 = vld [vmem:[#allocation14 + $0x68] sm:$0xff]
          %v1111 = vld [vmem:[#allocation14 + $0x70] sm:$0xff]
          %v1112 = vld [vmem:[#allocation14 + $0x78] sm:$0xff]
          %v1113 = vld [vmem:[#allocation8 + $0x2] sm:$0x1]
          %1114 = vmatprep.subr.mxu0 0.0
          %1115 = vmatpush1.msra.mxu0 %v1112
          %1116 = vmatprep.subr.mxu0 0.0
          %1117 = vmatpush1.msra.mxu0 %v1111
          %1118 = vmatprep.subr.mxu0 0.0
          %1119 = vmatpush1.msra.mxu0 %v1110
          %1120 = vmatprep.subr.mxu0 0.0
          %1121 = vmatpush1.msra.mxu0 %v1109
          %1122 = vmatprep.subr.mxu0 0.0
          %1123 = vmatpush1.msra.mxu0 %v1108
          %1124 = vmatprep.subr.mxu0 0.0
          %1125 = vmatpush1.msra.mxu0 %v1107
          %1126 = vmatprep.subr.mxu0 0.0
          %1127 = vmatpush1.msra.mxu0 %v1106
          %1128 = vmatprep.subr.mxu0 0.0
          %1129 = vmatpush1.msra.mxu0 %v1105
          %1130 = vmatprep.subr.mxu0 0.0
          %1131 = vmatpush1.msra.mxu0 %v1104
          %1132 = vmatprep.subr.mxu0 0.0
          %1133 = vmatpush1.msra.mxu0 %v1103
          %1134 = vmatprep.subr.mxu0 0.0
          %1135 = vmatpush1.msra.mxu0 %v1102
          %1136 = vmatprep.subr.mxu0 0.0
          %1137 = vmatpush1.msra.mxu0 %v1101
          %1138 = vmatprep.subr.mxu0 0.0
          %1139 = vmatpush1.msra.mxu0 %v1100
          %1140 = vmatprep.subr.mxu0 0.0
          %1141 = vmatpush1.msra.mxu0 %v1099
          %1142 = vmatprep.subr.mxu0 0.0
          %1143 = vmatpush1.msra.mxu0 %v1098
          %1144 = vmatprep.subr.mxu0 0.0
          %1145 = vmatpush1.msra.mxu0 %v1097
          %1146 = vmatprep.subr.mxu0 0.0
          %1147 = vmatpush2.msra.mxu0 0.0
          %1148 = vmatprep.subr.mxu0 0.0
          %1149 = vmatpush2.msra.mxu0 0.0
          %1150 = vmatprep.subr.mxu0 0.0
          %1151 = vmatpush2.msra.mxu0 0.0
          %1152 = vmatprep.subr.mxu0 0.0
          %1153 = vmatpush2.msra.mxu0 0.0
          %1154 = vmatprep.subr.mxu0 0.0
          %1155 = vmatpush2.msra.mxu0 0.0
          %1156 = vmatprep.subr.mxu0 0.0
          %1157 = vmatpush2.msra.mxu0 0.0
          %1158 = vmatprep.subr.mxu0 0.0
          %1159 = vmatpush2.msra.mxu0 0.0
          %1160 = vmatprep.subr.mxu0 0.0
          %1161 = vmatpush2.msra.mxu0 0.0
          %1162 = vmatprep.subr.mxu0 0.0
          %1163 = vmatpush2.msra.mxu0 0.0
          %1164 = vmatprep.subr.mxu0 0.0
          %1165 = vmatpush2.msra.mxu0 0.0
          %1166 = vmatprep.subr.mxu0 0.0
          %1167 = vmatpush2.msra.mxu0 0.0
          %1168 = vmatprep.subr.mxu0 0.0
          %1169 = vmatpush2.msra.mxu0 0.0
          %1170 = vmatprep.subr.mxu0 0.0
          %1171 = vmatpush2.msra.mxu0 0.0
          %1172 = vmatprep.subr.mxu0 0.0
          %1173 = vmatpush2.msra.mxu0 0.0
          %1174 = vmatprep.subr.mxu0 0.0
          %1175 = vmatpush2.msra.mxu0 0.0
          %1176 = vmatprep.subr.mxu0 0.0
          %1177 = vmatpush2.msra.mxu0 0.0
          %1178 = vmatprep.mubr.f32.mxu0 0.0
          %1179 = vmatmul.mubr.f32.gmra.mxu0 %v1096
          %v1180 = vpop.f32.mrf.mxu0
          %v1181 = vadd.f32 %v1113, %v1180
          %v1182 = vpop.f32.mrf.mxu0
          %1183 = vdwg.mxu0
          %1184 = vst [vmem:[#allocation3] sm:$0x1] %v1181
        $region100: #{tpu_custom_call.1} parent=59 // pred_fallthru
          _
        %v1185 = vld [vmem:[%s446] sm:$0xff]
        %v1186 = vld [vmem:[%s446 + $0x8] sm:$0xff]
        %v1187 = vld [vmem:[%s446 + $0x10] sm:$0xff]
        %v1188 = vld [vmem:[%s446 + $0x18] sm:$0xff]
        %v1189 = vld [vmem:[%s446 + $0x20] sm:$0xff]
        %v1190 = vld [vmem:[%s446 + $0x28] sm:$0xff]
        %v1191 = vld [vmem:[%s446 + $0x30] sm:$0xff]
        %v1192 = vld [vmem:[%s446 + $0x38] sm:$0xff]
        %v1193 = vld [vmem:[%s446 + $0x40] sm:$0xff]
        %v1194 = vld [vmem:[%s446 + $0x48] sm:$0xff]
        %v1195 = vld [vmem:[%s446 + $0x50] sm:$0xff]
        %v1196 = vld [vmem:[%s446 + $0x58] sm:$0xff]
        %v1197 = vld [vmem:[%s446 + $0x60] sm:$0xff]
        %v1198 = vld [vmem:[%s446 + $0x68] sm:$0xff]
        %v1199 = vld [vmem:[%s446 + $0x70] sm:$0xff]
        %v1200 = vld [vmem:[%s446 + $0x78] sm:$0xff]
        %v1201 = vld [vmem:[%s446 + $0x80] sm:$0xff]
        %v1202 = vld [vmem:[%s446 + $0x88] sm:$0xff]
        %v1203 = vld [vmem:[%s446 + $0x90] sm:$0xff]
        %v1204 = vld [vmem:[%s446 + $0x98] sm:$0xff]
        %v1205 = vld [vmem:[%s446 + $0xa0] sm:$0xff]
        %v1206 = vld [vmem:[%s446 + $0xa8] sm:$0xff]
        %v1207 = vld [vmem:[%s446 + $0xb0] sm:$0xff]
        %v1208 = vld [vmem:[%s446 + $0xb8] sm:$0xff]
        %v1209 = vld [vmem:[%s446 + $0xc0] sm:$0xff]
        %v1210 = vld [vmem:[%s446 + $0xc8] sm:$0xff]
        %v1211 = vld [vmem:[%s446 + $0xd0] sm:$0xff]
        %v1212 = vld [vmem:[%s446 + $0xd8] sm:$0xff]
        %v1213 = vld [vmem:[%s446 + $0xe0] sm:$0xff]
        %v1214 = vld [vmem:[%s446 + $0xe8] sm:$0xff]
        %v1215 = vld [vmem:[%s446 + $0xf0] sm:$0xff]
        %v1216 = vld [vmem:[%s446 + $0xf8] sm:$0xff]
        %v1217 = vld [vmem:[#allocation11] sm:$0xff]
        %v1218 = vld [vmem:[#allocation11 + $0x8] sm:$0xff]
        %v1219 = vld [vmem:[#allocation11 + $0x10] sm:$0xff]
        %v1220 = vld [vmem:[#allocation11 + $0x18] sm:$0xff]
        %v1221 = vld [vmem:[#allocation11 + $0x20] sm:$0xff]
        %v1222 = vld [vmem:[#allocation11 + $0x28] sm:$0xff]
        %v1223 = vld [vmem:[#allocation11 + $0x30] sm:$0xff]
        %v1224 = vld [vmem:[#allocation11 + $0x38] sm:$0xff]
        %v1225 = vld [vmem:[#allocation11 + $0x40] sm:$0xff]
        %v1226 = vld [vmem:[#allocation11 + $0x48] sm:$0xff]
        %v1227 = vld [vmem:[#allocation11 + $0x50] sm:$0xff]
        %v1228 = vld [vmem:[#allocation11 + $0x58] sm:$0xff]
        %v1229 = vld [vmem:[#allocation11 + $0x60] sm:$0xff]
        %v1230 = vld [vmem:[#allocation11 + $0x68] sm:$0xff]
        %v1231 = vld [vmem:[#allocation11 + $0x70] sm:$0xff]
        %v1232 = vld [vmem:[#allocation11 + $0x78] sm:$0xff]
        %v1233 = vld [vmem:[#allocation8] sm:$0x1]
        %v1234 = vlaneseq
        %v1235 = vshrl.u32 %v1234, 7
        %v1236 = vsub.s32 0, %v1235
        %v1237 = vrot.slane %v1233, %v1236
        %1238 = vmatprep.subr.mxu0 0.0
        %1239 = vmatpush1.msra.mxu0 %v1232
        %1240 = vmatprep.subr.mxu0 0.0
        %1241 = vmatpush1.msra.mxu0 %v1231
        %1242 = vmatprep.subr.mxu0 0.0
        %1243 = vmatpush1.msra.mxu0 %v1230
        %1244 = vmatprep.subr.mxu0 0.0
        %1245 = vmatpush1.msra.mxu0 %v1229
        %1246 = vmatprep.subr.mxu0 0.0
        %1247 = vmatpush1.msra.mxu0 %v1228
        %1248 = vmatprep.subr.mxu0 0.0
        %1249 = vmatpush1.msra.mxu0 %v1227
        %1250 = vmatprep.subr.mxu0 0.0
        %1251 = vmatpush1.msra.mxu0 %v1226
        %1252 = vmatprep.subr.mxu0 0.0
        %1253 = vmatpush1.msra.mxu0 %v1225
        %1254 = vmatprep.subr.mxu0 0.0
        %1255 = vmatpush1.msra.mxu0 %v1224
        %1256 = vmatprep.subr.mxu0 0.0
        %1257 = vmatpush1.msra.mxu0 %v1223
        %1258 = vmatprep.subr.mxu0 0.0
        %1259 = vmatpush1.msra.mxu0 %v1222
        %1260 = vmatprep.subr.mxu0 0.0
        %1261 = vmatpush1.msra.mxu0 %v1221
        %1262 = vmatprep.subr.mxu0 0.0
        %1263 = vmatpush1.msra.mxu0 %v1220
        %1264 = vmatprep.subr.mxu0 0.0
        %1265 = vmatpush1.msra.mxu0 %v1219
        %1266 = vmatprep.subr.mxu0 0.0
        %1267 = vmatpush1.msra.mxu0 %v1218
        %1268 = vmatprep.subr.mxu0 0.0
        %1269 = vmatpush1.msra.mxu0 %v1217
        %1270 = vmatprep.subr.mxu0 0.0
        %1271 = vmatpush2.msra.mxu0 0.0
        %1272 = vmatprep.subr.mxu0 0.0
        %1273 = vmatpush2.msra.mxu0 0.0
        %1274 = vmatprep.subr.mxu0 0.0
        %1275 = vmatpush2.msra.mxu0 0.0
        %1276 = vmatprep.subr.mxu0 0.0
        %1277 = vmatpush2.msra.mxu0 0.0
        %1278 = vmatprep.subr.mxu0 0.0
        %1279 = vmatpush2.msra.mxu0 0.0
        %1280 = vmatprep.subr.mxu0 0.0
        %1281 = vmatpush2.msra.mxu0 0.0
        %1282 = vmatprep.subr.mxu0 0.0
        %1283 = vmatpush2.msra.mxu0 0.0
        %1284 = vmatprep.subr.mxu0 0.0
        %1285 = vmatpush2.msra.mxu0 0.0
        %1286 = vmatprep.subr.mxu0 0.0
        %1287 = vmatpush2.msra.mxu0 0.0
        %1288 = vmatprep.subr.mxu0 0.0
        %1289 = vmatpush2.msra.mxu0 0.0
        %1290 = vmatprep.subr.mxu0 0.0
        %1291 = vmatpush2.msra.mxu0 0.0
        %1292 = vmatprep.subr.mxu0 0.0
        %1293 = vmatpush2.msra.mxu0 0.0
        %1294 = vmatprep.subr.mxu0 0.0
        %1295 = vmatpush2.msra.mxu0 0.0
        %1296 = vmatprep.subr.mxu0 0.0
        %1297 = vmatpush2.msra.mxu0 0.0
        %1298 = vmatprep.subr.mxu0 0.0
        %1299 = vmatpush2.msra.mxu0 0.0
        %1300 = vmatprep.subr.mxu0 0.0
        %1301 = vmatpush2.msra.mxu0 0.0
        %1302 = vmatprep.mubr.f32.mxu0 0.0
        %1303 = vmatmul.mubr.f32.gmra.mxu0 %v1185
        %v1304 = vpop.f32.mrf.mxu0
        %v1305 = vadd.f32 %v1237, %v1304
        %v1306 = vpop.f32.mrf.mxu0
        %1307 = vmatprep.mubr.f32.mxu0 0.0
        %1308 = vmatmul.mubr.f32.gmra.mxu0 %v1186
        %v1309 = vpop.f32.mrf.mxu0
        %v1310 = vadd.f32 %v1237, %v1309
        %v1311 = vpop.f32.mrf.mxu0
        %1312 = vmatprep.mubr.f32.mxu0 0.0
        %1313 = vmatmul.mubr.f32.gmra.mxu0 %v1187
        %v1314 = vpop.f32.mrf.mxu0
        %v1315 = vadd.f32 %v1237, %v1314
        %v1316 = vpop.f32.mrf.mxu0
        %1317 = vmatprep.mubr.f32.mxu0 0.0
        %1318 = vmatmul.mubr.f32.gmra.mxu0 %v1188
        %v1319 = vpop.f32.mrf.mxu0
        %v1320 = vadd.f32 %v1237, %v1319
        %v1321 = vpop.f32.mrf.mxu0
        %1322 = vmatprep.mubr.f32.mxu0 0.0
        %1323 = vmatmul.mubr.f32.gmra.mxu0 %v1189
        %v1324 = vpop.f32.mrf.mxu0
        %v1325 = vadd.f32 %v1237, %v1324
        %v1326 = vpop.f32.mrf.mxu0
        %1327 = vmatprep.mubr.f32.mxu0 0.0
        %1328 = vmatmul.mubr.f32.gmra.mxu0 %v1190
        %v1329 = vpop.f32.mrf.mxu0
        %v1330 = vadd.f32 %v1237, %v1329
        %v1331 = vpop.f32.mrf.mxu0
        %1332 = vmatprep.mubr.f32.mxu0 0.0
        %1333 = vmatmul.mubr.f32.gmra.mxu0 %v1191
        %v1334 = vpop.f32.mrf.mxu0
        %v1335 = vadd.f32 %v1237, %v1334
        %v1336 = vpop.f32.mrf.mxu0
        %1337 = vmatprep.mubr.f32.mxu0 0.0
        %1338 = vmatmul.mubr.f32.gmra.mxu0 %v1192
        %v1339 = vpop.f32.mrf.mxu0
        %v1340 = vadd.f32 %v1237, %v1339
        %v1341 = vpop.f32.mrf.mxu0
        %1342 = vmatprep.mubr.f32.mxu0 0.0
        %1343 = vmatmul.mubr.f32.gmra.mxu0 %v1193
        %v1344 = vpop.f32.mrf.mxu0
        %v1345 = vadd.f32 %v1237, %v1344
        %v1346 = vpop.f32.mrf.mxu0
        %1347 = vmatprep.mubr.f32.mxu0 0.0
        %1348 = vmatmul.mubr.f32.gmra.mxu0 %v1194
        %v1349 = vpop.f32.mrf.mxu0
        %v1350 = vadd.f32 %v1237, %v1349
        %v1351 = vpop.f32.mrf.mxu0
        %1352 = vmatprep.mubr.f32.mxu0 0.0
        %1353 = vmatmul.mubr.f32.gmra.mxu0 %v1195
        %v1354 = vpop.f32.mrf.mxu0
        %v1355 = vadd.f32 %v1237, %v1354
        %v1356 = vpop.f32.mrf.mxu0
        %1357 = vmatprep.mubr.f32.mxu0 0.0
        %1358 = vmatmul.mubr.f32.gmra.mxu0 %v1196
        %v1359 = vpop.f32.mrf.mxu0
        %v1360 = vadd.f32 %v1237, %v1359
        %v1361 = vpop.f32.mrf.mxu0
        %1362 = vmatprep.mubr.f32.mxu0 0.0
        %1363 = vmatmul.mubr.f32.gmra.mxu0 %v1197
        %v1364 = vpop.f32.mrf.mxu0
        %v1365 = vadd.f32 %v1237, %v1364
        %v1366 = vpop.f32.mrf.mxu0
        %1367 = vmatprep.mubr.f32.mxu0 0.0
        %1368 = vmatmul.mubr.f32.gmra.mxu0 %v1198
        %v1369 = vpop.f32.mrf.mxu0
        %v1370 = vadd.f32 %v1237, %v1369
        %v1371 = vpop.f32.mrf.mxu0
        %1372 = vmatprep.mubr.f32.mxu0 0.0
        %1373 = vmatmul.mubr.f32.gmra.mxu0 %v1199
        %v1374 = vpop.f32.mrf.mxu0
        %v1375 = vadd.f32 %v1237, %v1374
        %v1376 = vpop.f32.mrf.mxu0
        %1377 = vmatprep.mubr.f32.mxu0 0.0
        %1378 = vmatmul.mubr.f32.gmra.mxu0 %v1200
        %v1379 = vpop.f32.mrf.mxu0
        %v1380 = vadd.f32 %v1237, %v1379
        %v1381 = vpop.f32.mrf.mxu0
        %1382 = vmatprep.mubr.f32.mxu0 0.0
        %1383 = vmatmul.mubr.f32.gmra.mxu0 %v1201
        %v1384 = vpop.f32.mrf.mxu0
        %v1385 = vadd.f32 %v1237, %v1384
        %v1386 = vpop.f32.mrf.mxu0
        %1387 = vmatprep.mubr.f32.mxu0 0.0
        %1388 = vmatmul.mubr.f32.gmra.mxu0 %v1202
        %v1389 = vpop.f32.mrf.mxu0
        %v1390 = vadd.f32 %v1237, %v1389
        %v1391 = vpop.f32.mrf.mxu0
        %1392 = vmatprep.mubr.f32.mxu0 0.0
        %1393 = vmatmul.mubr.f32.gmra.mxu0 %v1203
        %v1394 = vpop.f32.mrf.mxu0
        %v1395 = vadd.f32 %v1237, %v1394
        %v1396 = vpop.f32.mrf.mxu0
        %1397 = vmatprep.mubr.f32.mxu0 0.0
        %1398 = vmatmul.mubr.f32.gmra.mxu0 %v1204
        %v1399 = vpop.f32.mrf.mxu0
        %v1400 = vadd.f32 %v1237, %v1399
        %v1401 = vpop.f32.mrf.mxu0
        %1402 = vmatprep.mubr.f32.mxu0 0.0
        %1403 = vmatmul.mubr.f32.gmra.mxu0 %v1205
        %v1404 = vpop.f32.mrf.mxu0
        %v1405 = vadd.f32 %v1237, %v1404
        %v1406 = vpop.f32.mrf.mxu0
        %1407 = vmatprep.mubr.f32.mxu0 0.0
        %1408 = vmatmul.mubr.f32.gmra.mxu0 %v1206
        %v1409 = vpop.f32.mrf.mxu0
        %v1410 = vadd.f32 %v1237, %v1409
        %v1411 = vpop.f32.mrf.mxu0
        %1412 = vmatprep.mubr.f32.mxu0 0.0
        %1413 = vmatmul.mubr.f32.gmra.mxu0 %v1207
        %v1414 = vpop.f32.mrf.mxu0
        %v1415 = vadd.f32 %v1237, %v1414
        %v1416 = vpop.f32.mrf.mxu0
        %1417 = vmatprep.mubr.f32.mxu0 0.0
        %1418 = vmatmul.mubr.f32.gmra.mxu0 %v1208
        %v1419 = vpop.f32.mrf.mxu0
        %v1420 = vadd.f32 %v1237, %v1419
        %v1421 = vpop.f32.mrf.mxu0
        %1422 = vmatprep.mubr.f32.mxu0 0.0
        %1423 = vmatmul.mubr.f32.gmra.mxu0 %v1209
        %v1424 = vpop.f32.mrf.mxu0
        %v1425 = vadd.f32 %v1237, %v1424
        %v1426 = vpop.f32.mrf.mxu0
        %1427 = vmatprep.mubr.f32.mxu0 0.0
        %1428 = vmatmul.mubr.f32.gmra.mxu0 %v1210
        %v1429 = vpop.f32.mrf.mxu0
        %v1430 = vadd.f32 %v1237, %v1429
        %v1431 = vpop.f32.mrf.mxu0
        %1432 = vmatprep.mubr.f32.mxu0 0.0
        %1433 = vmatmul.mubr.f32.gmra.mxu0 %v1211
        %v1434 = vpop.f32.mrf.mxu0
        %v1435 = vadd.f32 %v1237, %v1434
        %v1436 = vpop.f32.mrf.mxu0
        %1437 = vmatprep.mubr.f32.mxu0 0.0
        %1438 = vmatmul.mubr.f32.gmra.mxu0 %v1212
        %v1439 = vpop.f32.mrf.mxu0
        %v1440 = vadd.f32 %v1237, %v1439
        %v1441 = vpop.f32.mrf.mxu0
        %1442 = vmatprep.mubr.f32.mxu0 0.0
        %1443 = vmatmul.mubr.f32.gmra.mxu0 %v1213
        %v1444 = vpop.f32.mrf.mxu0
        %v1445 = vadd.f32 %v1237, %v1444
        %v1446 = vpop.f32.mrf.mxu0
        %1447 = vmatprep.mubr.f32.mxu0 0.0
        %1448 = vmatmul.mubr.f32.gmra.mxu0 %v1214
        %v1449 = vpop.f32.mrf.mxu0
        %v1450 = vadd.f32 %v1237, %v1449
        %v1451 = vpop.f32.mrf.mxu0
        %1452 = vmatprep.mubr.f32.mxu0 0.0
        %1453 = vmatmul.mubr.f32.gmra.mxu0 %v1215
        %v1454 = vpop.f32.mrf.mxu0
        %v1455 = vadd.f32 %v1237, %v1454
        %v1456 = vpop.f32.mrf.mxu0
        %1457 = vmatprep.mubr.f32.mxu0 0.0
        %1458 = vmatmul.mubr.f32.gmra.mxu0 %v1216
        %v1459 = vpop.f32.mrf.mxu0
        %v1460 = vadd.f32 %v1237, %v1459
        %v1461 = vpop.f32.mrf.mxu0
        %1462 = vdwg.mxu0
        %vm1463 = vcmp.ge.f32.partialorder %v1305, 0.0
        %vm1464 = vcmp.ge.f32.partialorder %v1310, 0.0
        %vm1465 = vcmp.ge.f32.partialorder %v1315, 0.0
        %vm1466 = vcmp.ge.f32.partialorder %v1320, 0.0
        %vm1467 = vcmp.ge.f32.partialorder %v1325, 0.0
        %vm1468 = vcmp.ge.f32.partialorder %v1330, 0.0
        %vm1469 = vcmp.ge.f32.partialorder %v1335, 0.0
        %vm1470 = vcmp.ge.f32.partialorder %v1340, 0.0
        %vm1471 = vcmp.ge.f32.partialorder %v1345, 0.0
        %vm1472 = vcmp.ge.f32.partialorder %v1350, 0.0
        %vm1473 = vcmp.ge.f32.partialorder %v1355, 0.0
        %vm1474 = vcmp.ge.f32.partialorder %v1360, 0.0
        %vm1475 = vcmp.ge.f32.partialorder %v1365, 0.0
        %vm1476 = vcmp.ge.f32.partialorder %v1370, 0.0
        %vm1477 = vcmp.ge.f32.partialorder %v1375, 0.0
        %vm1478 = vcmp.ge.f32.partialorder %v1380, 0.0
        %vm1479 = vcmp.ge.f32.partialorder %v1385, 0.0
        %vm1480 = vcmp.ge.f32.partialorder %v1390, 0.0
        %vm1481 = vcmp.ge.f32.partialorder %v1395, 0.0
        %vm1482 = vcmp.ge.f32.partialorder %v1400, 0.0
        %vm1483 = vcmp.ge.f32.partialorder %v1405, 0.0
        %vm1484 = vcmp.ge.f32.partialorder %v1410, 0.0
        %vm1485 = vcmp.ge.f32.partialorder %v1415, 0.0
        %vm1486 = vcmp.ge.f32.partialorder %v1420, 0.0
        %vm1487 = vcmp.ge.f32.partialorder %v1425, 0.0
        %vm1488 = vcmp.ge.f32.partialorder %v1430, 0.0
        %vm1489 = vcmp.ge.f32.partialorder %v1435, 0.0
        %vm1490 = vcmp.ge.f32.partialorder %v1440, 0.0
        %vm1491 = vcmp.ge.f32.partialorder %v1445, 0.0
        %vm1492 = vcmp.ge.f32.partialorder %v1450, 0.0
        %vm1493 = vcmp.ge.f32.partialorder %v1455, 0.0
        %vm1494 = vcmp.ge.f32.partialorder %v1460, 0.0
        %v1495 = vmul.f32 %v1305, 0.1
        %v1496 = vmul.f32 %v1310, 0.1
        %v1497 = vmul.f32 %v1315, 0.1
        %v1498 = vmul.f32 %v1320, 0.1
        %v1499 = vmul.f32 %v1325, 0.1
        %v1500 = vmul.f32 %v1330, 0.1
        %v1501 = vmul.f32 %v1335, 0.1
        %v1502 = vmul.f32 %v1340, 0.1
        %v1503 = vmul.f32 %v1345, 0.1
        %v1504 = vmul.f32 %v1350, 0.1
        %v1505 = vmul.f32 %v1355, 0.1
        %v1506 = vmul.f32 %v1360, 0.1
        %v1507 = vmul.f32 %v1365, 0.1
        %v1508 = vmul.f32 %v1370, 0.1
        %v1509 = vmul.f32 %v1375, 0.1
        %v1510 = vmul.f32 %v1380, 0.1
        %v1511 = vmul.f32 %v1385, 0.1
        %v1512 = vmul.f32 %v1390, 0.1
        %v1513 = vmul.f32 %v1395, 0.1
        %v1514 = vmul.f32 %v1400, 0.1
        %v1515 = vmul.f32 %v1405, 0.1
        %v1516 = vmul.f32 %v1410, 0.1
        %v1517 = vmul.f32 %v1415, 0.1
        %v1518 = vmul.f32 %v1420, 0.1
        %v1519 = vmul.f32 %v1425, 0.1
        %v1520 = vmul.f32 %v1430, 0.1
        %v1521 = vmul.f32 %v1435, 0.1
        %v1522 = vmul.f32 %v1440, 0.1
        %v1523 = vmul.f32 %v1445, 0.1
        %v1524 = vmul.f32 %v1450, 0.1
        %v1525 = vmul.f32 %v1455, 0.1
        %v1526 = vmul.f32 %v1460, 0.1
        %v1527 = vsel %vm1463, %v1305, %v1495
        %v1528 = vsel %vm1464, %v1310, %v1496
        %v1529 = vsel %vm1465, %v1315, %v1497
        %v1530 = vsel %vm1466, %v1320, %v1498
        %v1531 = vsel %vm1467, %v1325, %v1499
        %v1532 = vsel %vm1468, %v1330, %v1500
        %v1533 = vsel %vm1469, %v1335, %v1501
        %v1534 = vsel %vm1470, %v1340, %v1502
        %v1535 = vsel %vm1471, %v1345, %v1503
        %v1536 = vsel %vm1472, %v1350, %v1504
        %v1537 = vsel %vm1473, %v1355, %v1505
        %v1538 = vsel %vm1474, %v1360, %v1506
        %v1539 = vsel %vm1475, %v1365, %v1507
        %v1540 = vsel %vm1476, %v1370, %v1508
        %v1541 = vsel %vm1477, %v1375, %v1509
        %v1542 = vsel %vm1478, %v1380, %v1510
        %v1543 = vsel %vm1479, %v1385, %v1511
        %v1544 = vsel %vm1480, %v1390, %v1512
        %v1545 = vsel %vm1481, %v1395, %v1513
        %v1546 = vsel %vm1482, %v1400, %v1514
        %v1547 = vsel %vm1483, %v1405, %v1515
        %v1548 = vsel %vm1484, %v1410, %v1516
        %v1549 = vsel %vm1485, %v1415, %v1517
        %v1550 = vsel %vm1486, %v1420, %v1518
        %v1551 = vsel %vm1487, %v1425, %v1519
        %v1552 = vsel %vm1488, %v1430, %v1520
        %v1553 = vsel %vm1489, %v1435, %v1521
        %v1554 = vsel %vm1490, %v1440, %v1522
        %v1555 = vsel %vm1491, %v1445, %v1523
        %v1556 = vsel %vm1492, %v1450, %v1524
        %v1557 = vsel %vm1493, %v1455, %v1525
        %v1558 = vsel %vm1494, %v1460, %v1526
        %v1559 = vld [vmem:[#allocation2] sm:$0xff]
        %v1560 = vld [vmem:[#allocation2 + $0x8] sm:$0xff]
        %v1561 = vld [vmem:[#allocation2 + $0x10] sm:$0xff]
        %v1562 = vld [vmem:[#allocation2 + $0x18] sm:$0xff]
        %v1563 = vld [vmem:[#allocation2 + $0x20] sm:$0xff]
        %v1564 = vld [vmem:[#allocation2 + $0x28] sm:$0xff]
        %v1565 = vld [vmem:[#allocation2 + $0x30] sm:$0xff]
        %v1566 = vld [vmem:[#allocation2 + $0x38] sm:$0xff]
        %v1567 = vld [vmem:[#allocation2 + $0x40] sm:$0xff]
        %v1568 = vld [vmem:[#allocation2 + $0x48] sm:$0xff]
        %v1569 = vld [vmem:[#allocation2 + $0x50] sm:$0xff]
        %v1570 = vld [vmem:[#allocation2 + $0x58] sm:$0xff]
        %v1571 = vld [vmem:[#allocation2 + $0x60] sm:$0xff]
        %v1572 = vld [vmem:[#allocation2 + $0x68] sm:$0xff]
        %v1573 = vld [vmem:[#allocation2 + $0x70] sm:$0xff]
        %v1574 = vld [vmem:[#allocation2 + $0x78] sm:$0xff]
        %v1575 = vld [vmem:[#allocation3] sm:$0x1]
        %v1577 = vlaneseq
        %v1578 = vshrl.u32 %v1577, 7
        %v1579 = vsub.s32 0, %v1578
        %v1580 = vrot.slane %v1575, %v1579
        %1582 = vmatprep.subr.mxu0 0.0
        %1583 = vmatpush1.msra.mxu0 %v1574
        %1584 = vmatprep.subr.mxu0 0.0
        %1585 = vmatpush1.msra.mxu0 %v1573
        %1586 = vmatprep.subr.mxu0 0.0
        %1587 = vmatpush1.msra.mxu0 %v1572
        %1588 = vmatprep.subr.mxu0 0.0
        %1589 = vmatpush1.msra.mxu0 %v1571
        %1590 = vmatprep.subr.mxu0 0.0
        %1591 = vmatpush1.msra.mxu0 %v1570
        %1592 = vmatprep.subr.mxu0 0.0
        %1593 = vmatpush1.msra.mxu0 %v1569
        %1594 = vmatprep.subr.mxu0 0.0
        %1595 = vmatpush1.msra.mxu0 %v1568
        %1596 = vmatprep.subr.mxu0 0.0
        %1597 = vmatpush1.msra.mxu0 %v1567
        %1598 = vmatprep.subr.mxu0 0.0
        %1599 = vmatpush1.msra.mxu0 %v1566
        %1600 = vmatprep.subr.mxu0 0.0
        %1601 = vmatpush1.msra.mxu0 %v1565
        %1602 = vmatprep.subr.mxu0 0.0
        %1603 = vmatpush1.msra.mxu0 %v1564
        %1604 = vmatprep.subr.mxu0 0.0
        %1605 = vmatpush1.msra.mxu0 %v1563
        %1606 = vmatprep.subr.mxu0 0.0
        %1607 = vmatpush1.msra.mxu0 %v1562
        %1608 = vmatprep.subr.mxu0 0.0
        %1609 = vmatpush1.msra.mxu0 %v1561
        %1610 = vmatprep.subr.mxu0 0.0
        %1611 = vmatpush1.msra.mxu0 %v1560
        %1612 = vmatprep.subr.mxu0 0.0
        %1613 = vmatpush1.msra.mxu0 %v1559
        %1614 = vmatprep.subr.mxu0 0.0
        %1615 = vmatpush2.msra.mxu0 0.0
        %1616 = vmatprep.subr.mxu0 0.0
        %1617 = vmatpush2.msra.mxu0 0.0
        %1618 = vmatprep.subr.mxu0 0.0
        %1619 = vmatpush2.msra.mxu0 0.0
        %1620 = vmatprep.subr.mxu0 0.0
        %1621 = vmatpush2.msra.mxu0 0.0
        %1622 = vmatprep.subr.mxu0 0.0
        %1623 = vmatpush2.msra.mxu0 0.0
        %1624 = vmatprep.subr.mxu0 0.0
        %1625 = vmatpush2.msra.mxu0 0.0
        %1626 = vmatprep.subr.mxu0 0.0
        %1627 = vmatpush2.msra.mxu0 0.0
        %1628 = vmatprep.subr.mxu0 0.0
        %1629 = vmatpush2.msra.mxu0 0.0
        %1630 = vmatprep.subr.mxu0 0.0
        %1631 = vmatpush2.msra.mxu0 0.0
        %1632 = vmatprep.subr.mxu0 0.0
        %1633 = vmatpush2.msra.mxu0 0.0
        %1634 = vmatprep.subr.mxu0 0.0
        %1635 = vmatpush2.msra.mxu0 0.0
        %1636 = vmatprep.subr.mxu0 0.0
        %1637 = vmatpush2.msra.mxu0 0.0
        %1638 = vmatprep.subr.mxu0 0.0
        %1639 = vmatpush2.msra.mxu0 0.0
        %1640 = vmatprep.subr.mxu0 0.0
        %1641 = vmatpush2.msra.mxu0 0.0
        %1642 = vmatprep.subr.mxu0 0.0
        %1643 = vmatpush2.msra.mxu0 0.0
        %1644 = vmatprep.subr.mxu0 0.0
        %1645 = vmatpush2.msra.mxu0 0.0
        %1646 = vmatprep.mubr.f32.mxu0 0.0
        %1647 = vmatmul.mubr.f32.gmra.mxu0 %v1527
        %v1648 = vpop.f32.mrf.mxu0
        %v1649 = vadd.f32 %v1580, %v1648
        %v1650 = vpop.f32.mrf.mxu0
        %1651 = vmatprep.mubr.f32.mxu0 0.0
        %1652 = vmatmul.mubr.f32.gmra.mxu0 %v1528
        %v1653 = vpop.f32.mrf.mxu0
        %v1654 = vadd.f32 %v1580, %v1653
        %v1655 = vpop.f32.mrf.mxu0
        %1656 = vmatprep.mubr.f32.mxu0 0.0
        %1657 = vmatmul.mubr.f32.gmra.mxu0 %v1529
        %v1658 = vpop.f32.mrf.mxu0
        %v1659 = vadd.f32 %v1580, %v1658
        %v1660 = vpop.f32.mrf.mxu0
        %1661 = vmatprep.mubr.f32.mxu0 0.0
        %1662 = vmatmul.mubr.f32.gmra.mxu0 %v1530
        %v1663 = vpop.f32.mrf.mxu0
        %v1664 = vadd.f32 %v1580, %v1663
        %v1665 = vpop.f32.mrf.mxu0
        %1666 = vmatprep.mubr.f32.mxu0 0.0
        %1667 = vmatmul.mubr.f32.gmra.mxu0 %v1531
        %v1668 = vpop.f32.mrf.mxu0
        %v1669 = vadd.f32 %v1580, %v1668
        %v1670 = vpop.f32.mrf.mxu0
        %1671 = vmatprep.mubr.f32.mxu0 0.0
        %1672 = vmatmul.mubr.f32.gmra.mxu0 %v1532
        %v1673 = vpop.f32.mrf.mxu0
        %v1674 = vadd.f32 %v1580, %v1673
        %v1675 = vpop.f32.mrf.mxu0
        %1676 = vmatprep.mubr.f32.mxu0 0.0
        %1677 = vmatmul.mubr.f32.gmra.mxu0 %v1533
        %v1678 = vpop.f32.mrf.mxu0
        %v1679 = vadd.f32 %v1580, %v1678
        %v1680 = vpop.f32.mrf.mxu0
        %1681 = vmatprep.mubr.f32.mxu0 0.0
        %1682 = vmatmul.mubr.f32.gmra.mxu0 %v1534
        %v1683 = vpop.f32.mrf.mxu0
        %v1684 = vadd.f32 %v1580, %v1683
        %v1685 = vpop.f32.mrf.mxu0
        %1686 = vmatprep.mubr.f32.mxu0 0.0
        %1687 = vmatmul.mubr.f32.gmra.mxu0 %v1535
        %v1688 = vpop.f32.mrf.mxu0
        %v1689 = vadd.f32 %v1580, %v1688
        %v1690 = vpop.f32.mrf.mxu0
        %1691 = vmatprep.mubr.f32.mxu0 0.0
        %1692 = vmatmul.mubr.f32.gmra.mxu0 %v1536
        %v1693 = vpop.f32.mrf.mxu0
        %v1694 = vadd.f32 %v1580, %v1693
        %v1695 = vpop.f32.mrf.mxu0
        %1696 = vmatprep.mubr.f32.mxu0 0.0
        %1697 = vmatmul.mubr.f32.gmra.mxu0 %v1537
        %v1698 = vpop.f32.mrf.mxu0
        %v1699 = vadd.f32 %v1580, %v1698
        %v1700 = vpop.f32.mrf.mxu0
        %1701 = vmatprep.mubr.f32.mxu0 0.0
        %1702 = vmatmul.mubr.f32.gmra.mxu0 %v1538
        %v1703 = vpop.f32.mrf.mxu0
        %v1704 = vadd.f32 %v1580, %v1703
        %v1705 = vpop.f32.mrf.mxu0
        %1706 = vmatprep.mubr.f32.mxu0 0.0
        %1707 = vmatmul.mubr.f32.gmra.mxu0 %v1539
        %v1708 = vpop.f32.mrf.mxu0
        %v1709 = vadd.f32 %v1580, %v1708
        %v1710 = vpop.f32.mrf.mxu0
        %1711 = vmatprep.mubr.f32.mxu0 0.0
        %1712 = vmatmul.mubr.f32.gmra.mxu0 %v1540
        %v1713 = vpop.f32.mrf.mxu0
        %v1714 = vadd.f32 %v1580, %v1713
        %v1715 = vpop.f32.mrf.mxu0
        %1716 = vmatprep.mubr.f32.mxu0 0.0
        %1717 = vmatmul.mubr.f32.gmra.mxu0 %v1541
        %v1718 = vpop.f32.mrf.mxu0
        %v1719 = vadd.f32 %v1580, %v1718
        %v1720 = vpop.f32.mrf.mxu0
        %1721 = vmatprep.mubr.f32.mxu0 0.0
        %1722 = vmatmul.mubr.f32.gmra.mxu0 %v1542
        %v1723 = vpop.f32.mrf.mxu0
        %v1724 = vadd.f32 %v1580, %v1723
        %v1725 = vpop.f32.mrf.mxu0
        %1726 = vmatprep.mubr.f32.mxu0 0.0
        %1727 = vmatmul.mubr.f32.gmra.mxu0 %v1543
        %v1728 = vpop.f32.mrf.mxu0
        %v1729 = vadd.f32 %v1580, %v1728
        %v1730 = vpop.f32.mrf.mxu0
        %1731 = vmatprep.mubr.f32.mxu0 0.0
        %1732 = vmatmul.mubr.f32.gmra.mxu0 %v1544
        %v1733 = vpop.f32.mrf.mxu0
        %v1734 = vadd.f32 %v1580, %v1733
        %v1735 = vpop.f32.mrf.mxu0
        %1736 = vmatprep.mubr.f32.mxu0 0.0
        %1737 = vmatmul.mubr.f32.gmra.mxu0 %v1545
        %v1738 = vpop.f32.mrf.mxu0
        %v1739 = vadd.f32 %v1580, %v1738
        %v1740 = vpop.f32.mrf.mxu0
        %1741 = vmatprep.mubr.f32.mxu0 0.0
        %1742 = vmatmul.mubr.f32.gmra.mxu0 %v1546
        %v1743 = vpop.f32.mrf.mxu0
        %v1744 = vadd.f32 %v1580, %v1743
        %v1745 = vpop.f32.mrf.mxu0
        %1746 = vmatprep.mubr.f32.mxu0 0.0
        %1747 = vmatmul.mubr.f32.gmra.mxu0 %v1547
        %v1748 = vpop.f32.mrf.mxu0
        %v1749 = vadd.f32 %v1580, %v1748
        %v1750 = vpop.f32.mrf.mxu0
        %1751 = vmatprep.mubr.f32.mxu0 0.0
        %1752 = vmatmul.mubr.f32.gmra.mxu0 %v1548
        %v1753 = vpop.f32.mrf.mxu0
        %v1754 = vadd.f32 %v1580, %v1753
        %v1755 = vpop.f32.mrf.mxu0
        %1756 = vmatprep.mubr.f32.mxu0 0.0
        %1757 = vmatmul.mubr.f32.gmra.mxu0 %v1549
        %v1758 = vpop.f32.mrf.mxu0
        %v1759 = vadd.f32 %v1580, %v1758
        %v1760 = vpop.f32.mrf.mxu0
        %1761 = vmatprep.mubr.f32.mxu0 0.0
        %1762 = vmatmul.mubr.f32.gmra.mxu0 %v1550
        %v1763 = vpop.f32.mrf.mxu0
        %v1764 = vadd.f32 %v1580, %v1763
        %v1765 = vpop.f32.mrf.mxu0
        %1766 = vmatprep.mubr.f32.mxu0 0.0
        %1767 = vmatmul.mubr.f32.gmra.mxu0 %v1551
        %v1768 = vpop.f32.mrf.mxu0
        %v1769 = vadd.f32 %v1580, %v1768
        %v1770 = vpop.f32.mrf.mxu0
        %1771 = vmatprep.mubr.f32.mxu0 0.0
        %1772 = vmatmul.mubr.f32.gmra.mxu0 %v1552
        %v1773 = vpop.f32.mrf.mxu0
        %v1774 = vadd.f32 %v1580, %v1773
        %v1775 = vpop.f32.mrf.mxu0
        %1776 = vmatprep.mubr.f32.mxu0 0.0
        %1777 = vmatmul.mubr.f32.gmra.mxu0 %v1553
        %v1778 = vpop.f32.mrf.mxu0
        %v1779 = vadd.f32 %v1580, %v1778
        %v1780 = vpop.f32.mrf.mxu0
        %1781 = vmatprep.mubr.f32.mxu0 0.0
        %1782 = vmatmul.mubr.f32.gmra.mxu0 %v1554
        %v1783 = vpop.f32.mrf.mxu0
        %v1784 = vadd.f32 %v1580, %v1783
        %v1785 = vpop.f32.mrf.mxu0
        %1786 = vmatprep.mubr.f32.mxu0 0.0
        %1787 = vmatmul.mubr.f32.gmra.mxu0 %v1555
        %v1788 = vpop.f32.mrf.mxu0
        %v1789 = vadd.f32 %v1580, %v1788
        %v1790 = vpop.f32.mrf.mxu0
        %1791 = vmatprep.mubr.f32.mxu0 0.0
        %1792 = vmatmul.mubr.f32.gmra.mxu0 %v1556
        %v1793 = vpop.f32.mrf.mxu0
        %v1794 = vadd.f32 %v1580, %v1793
        %v1795 = vpop.f32.mrf.mxu0
        %1796 = vmatprep.mubr.f32.mxu0 0.0
        %1797 = vmatmul.mubr.f32.gmra.mxu0 %v1557
        %v1798 = vpop.f32.mrf.mxu0
        %v1799 = vadd.f32 %v1580, %v1798
        %v1800 = vpop.f32.mrf.mxu0
        %1801 = vmatprep.mubr.f32.mxu0 0.0
        %1802 = vmatmul.mubr.f32.gmra.mxu0 %v1558
        %v1803 = vpop.f32.mrf.mxu0
        %v1804 = vadd.f32 %v1580, %v1803
        %v1805 = vpop.f32.mrf.mxu0
        %1806 = vdwg.mxu0
        %vm1807 = vcmp.ge.f32.partialorder %v1649, 0.0
        %vm1808 = vcmp.ge.f32.partialorder %v1654, 0.0
        %vm1809 = vcmp.ge.f32.partialorder %v1659, 0.0
        %vm1810 = vcmp.ge.f32.partialorder %v1664, 0.0
        %vm1811 = vcmp.ge.f32.partialorder %v1669, 0.0
        %vm1812 = vcmp.ge.f32.partialorder %v1674, 0.0
        %vm1813 = vcmp.ge.f32.partialorder %v1679, 0.0
        %vm1814 = vcmp.ge.f32.partialorder %v1684, 0.0
        %vm1815 = vcmp.ge.f32.partialorder %v1689, 0.0
        %vm1816 = vcmp.ge.f32.partialorder %v1694, 0.0
        %vm1817 = vcmp.ge.f32.partialorder %v1699, 0.0
        %vm1818 = vcmp.ge.f32.partialorder %v1704, 0.0
        %vm1819 = vcmp.ge.f32.partialorder %v1709, 0.0
        %vm1820 = vcmp.ge.f32.partialorder %v1714, 0.0
        %vm1821 = vcmp.ge.f32.partialorder %v1719, 0.0
        %vm1822 = vcmp.ge.f32.partialorder %v1724, 0.0
        %vm1823 = vcmp.ge.f32.partialorder %v1729, 0.0
        %vm1824 = vcmp.ge.f32.partialorder %v1734, 0.0
        %vm1825 = vcmp.ge.f32.partialorder %v1739, 0.0
        %vm1826 = vcmp.ge.f32.partialorder %v1744, 0.0
        %vm1827 = vcmp.ge.f32.partialorder %v1749, 0.0
        %vm1828 = vcmp.ge.f32.partialorder %v1754, 0.0
        %vm1829 = vcmp.ge.f32.partialorder %v1759, 0.0
        %vm1830 = vcmp.ge.f32.partialorder %v1764, 0.0
        %vm1831 = vcmp.ge.f32.partialorder %v1769, 0.0
        %vm1832 = vcmp.ge.f32.partialorder %v1774, 0.0
        %vm1833 = vcmp.ge.f32.partialorder %v1779, 0.0
        %vm1834 = vcmp.ge.f32.partialorder %v1784, 0.0
        %vm1835 = vcmp.ge.f32.partialorder %v1789, 0.0
        %vm1836 = vcmp.ge.f32.partialorder %v1794, 0.0
        %vm1837 = vcmp.ge.f32.partialorder %v1799, 0.0
        %vm1838 = vcmp.ge.f32.partialorder %v1804, 0.0
        %v1839 = vmul.f32 %v1649, 0.1
        %v1840 = vmul.f32 %v1654, 0.1
        %v1841 = vmul.f32 %v1659, 0.1
        %v1842 = vmul.f32 %v1664, 0.1
        %v1843 = vmul.f32 %v1669, 0.1
        %v1844 = vmul.f32 %v1674, 0.1
        %v1845 = vmul.f32 %v1679, 0.1
        %v1846 = vmul.f32 %v1684, 0.1
        %v1847 = vmul.f32 %v1689, 0.1
        %v1848 = vmul.f32 %v1694, 0.1
        %v1849 = vmul.f32 %v1699, 0.1
        %v1850 = vmul.f32 %v1704, 0.1
        %v1851 = vmul.f32 %v1709, 0.1
        %v1852 = vmul.f32 %v1714, 0.1
        %v1853 = vmul.f32 %v1719, 0.1
        %v1854 = vmul.f32 %v1724, 0.1
        %v1855 = vmul.f32 %v1729, 0.1
        %v1856 = vmul.f32 %v1734, 0.1
        %v1857 = vmul.f32 %v1739, 0.1
        %v1858 = vmul.f32 %v1744, 0.1
        %v1859 = vmul.f32 %v1749, 0.1
        %v1860 = vmul.f32 %v1754, 0.1
        %v1861 = vmul.f32 %v1759, 0.1
        %v1862 = vmul.f32 %v1764, 0.1
        %v1863 = vmul.f32 %v1769, 0.1
        %v1864 = vmul.f32 %v1774, 0.1
        %v1865 = vmul.f32 %v1779, 0.1
        %v1866 = vmul.f32 %v1784, 0.1
        %v1867 = vmul.f32 %v1789, 0.1
        %v1868 = vmul.f32 %v1794, 0.1
        %v1869 = vmul.f32 %v1799, 0.1
        %v1870 = vmul.f32 %v1804, 0.1
        %v1871 = vsel %vm1807, %v1649, %v1839
        %v1872 = vsel %vm1808, %v1654, %v1840
        %v1873 = vsel %vm1809, %v1659, %v1841
        %v1874 = vsel %vm1810, %v1664, %v1842
        %v1875 = vsel %vm1811, %v1669, %v1843
        %v1876 = vsel %vm1812, %v1674, %v1844
        %v1877 = vsel %vm1813, %v1679, %v1845
        %v1878 = vsel %vm1814, %v1684, %v1846
        %v1879 = vsel %vm1815, %v1689, %v1847
        %v1880 = vsel %vm1816, %v1694, %v1848
        %v1881 = vsel %vm1817, %v1699, %v1849
        %v1882 = vsel %vm1818, %v1704, %v1850
        %v1883 = vsel %vm1819, %v1709, %v1851
        %v1884 = vsel %vm1820, %v1714, %v1852
        %v1885 = vsel %vm1821, %v1719, %v1853
        %v1886 = vsel %vm1822, %v1724, %v1854
        %v1887 = vsel %vm1823, %v1729, %v1855
        %v1888 = vsel %vm1824, %v1734, %v1856
        %v1889 = vsel %vm1825, %v1739, %v1857
        %v1890 = vsel %vm1826, %v1744, %v1858
        %v1891 = vsel %vm1827, %v1749, %v1859
        %v1892 = vsel %vm1828, %v1754, %v1860
        %v1893 = vsel %vm1829, %v1759, %v1861
        %v1894 = vsel %vm1830, %v1764, %v1862
        %v1895 = vsel %vm1831, %v1769, %v1863
        %v1896 = vsel %vm1832, %v1774, %v1864
        %v1897 = vsel %vm1833, %v1779, %v1865
        %v1898 = vsel %vm1834, %v1784, %v1866
        %v1899 = vsel %vm1835, %v1789, %v1867
        %v1900 = vsel %vm1836, %v1794, %v1868
        %v1901 = vsel %vm1837, %v1799, %v1869
        %v1902 = vsel %vm1838, %v1804, %v1870
        %v1903 = vadd.f32 %v1185, %v1871
        %v1904 = vadd.f32 %v1186, %v1872
        %v1905 = vadd.f32 %v1187, %v1873
        %v1906 = vadd.f32 %v1188, %v1874
        %v1907 = vadd.f32 %v1189, %v1875
        %v1908 = vadd.f32 %v1190, %v1876
        %v1909 = vadd.f32 %v1191, %v1877
        %v1910 = vadd.f32 %v1192, %v1878
        %v1911 = vadd.f32 %v1193, %v1879
        %v1912 = vadd.f32 %v1194, %v1880
        %v1913 = vadd.f32 %v1195, %v1881
        %v1914 = vadd.f32 %v1196, %v1882
        %v1915 = vadd.f32 %v1197, %v1883
        %v1916 = vadd.f32 %v1198, %v1884
        %v1917 = vadd.f32 %v1199, %v1885
        %v1918 = vadd.f32 %v1200, %v1886
        %v1919 = vadd.f32 %v1201, %v1887
        %v1920 = vadd.f32 %v1202, %v1888
        %v1921 = vadd.f32 %v1203, %v1889
        %v1922 = vadd.f32 %v1204, %v1890
        %v1923 = vadd.f32 %v1205, %v1891
        %v1924 = vadd.f32 %v1206, %v1892
        %v1925 = vadd.f32 %v1207, %v1893
        %v1926 = vadd.f32 %v1208, %v1894
        %v1927 = vadd.f32 %v1209, %v1895
        %v1928 = vadd.f32 %v1210, %v1896
        %v1929 = vadd.f32 %v1211, %v1897
        %v1930 = vadd.f32 %v1212, %v1898
        %v1931 = vadd.f32 %v1213, %v1899
        %v1932 = vadd.f32 %v1214, %v1900
        %v1933 = vadd.f32 %v1215, %v1901
        %v1934 = vadd.f32 %v1216, %v1902
        %v1935 = vld [vmem:[#allocation15] sm:$0xff]
        %v1936 = vld [vmem:[#allocation15 + $0x8] sm:$0xff]
        %v1937 = vld [vmem:[#allocation15 + $0x10] sm:$0xff]
        %v1938 = vld [vmem:[#allocation15 + $0x18] sm:$0xff]
        %v1939 = vld [vmem:[#allocation15 + $0x20] sm:$0xff]
        %v1940 = vld [vmem:[#allocation15 + $0x28] sm:$0xff]
        %v1941 = vld [vmem:[#allocation15 + $0x30] sm:$0xff]
        %v1942 = vld [vmem:[#allocation15 + $0x38] sm:$0xff]
        %v1943 = vld [vmem:[#allocation15 + $0x40] sm:$0xff]
        %v1944 = vld [vmem:[#allocation15 + $0x48] sm:$0xff]
        %v1945 = vld [vmem:[#allocation15 + $0x50] sm:$0xff]
        %v1946 = vld [vmem:[#allocation15 + $0x58] sm:$0xff]
        %v1947 = vld [vmem:[#allocation15 + $0x60] sm:$0xff]
        %v1948 = vld [vmem:[#allocation15 + $0x68] sm:$0xff]
        %v1949 = vld [vmem:[#allocation15 + $0x70] sm:$0xff]
        %v1950 = vld [vmem:[#allocation15 + $0x78] sm:$0xff]
        %v1951 = vld [vmem:[#allocation8 + $0x3] sm:$0x1]
        %v1952 = vlaneseq
        %v1953 = vshrl.u32 %v1952, 7
        %v1954 = vsub.s32 0, %v1953
        %v1955 = vrot.slane %v1951, %v1954
        %1956 = vmatprep.subr.mxu0 0.0
        %1957 = vmatpush1.msra.mxu0 %v1950
        %1958 = vmatprep.subr.mxu0 0.0
        %1959 = vmatpush1.msra.mxu0 %v1949
        %1960 = vmatprep.subr.mxu0 0.0
        %1961 = vmatpush1.msra.mxu0 %v1948
        %1962 = vmatprep.subr.mxu0 0.0
        %1963 = vmatpush1.msra.mxu0 %v1947
        %1964 = vmatprep.subr.mxu0 0.0
        %1965 = vmatpush1.msra.mxu0 %v1946
        %1966 = vmatprep.subr.mxu0 0.0
        %1967 = vmatpush1.msra.mxu0 %v1945
        %1968 = vmatprep.subr.mxu0 0.0
        %1969 = vmatpush1.msra.mxu0 %v1944
        %1970 = vmatprep.subr.mxu0 0.0
        %1971 = vmatpush1.msra.mxu0 %v1943
        %1972 = vmatprep.subr.mxu0 0.0
        %1973 = vmatpush1.msra.mxu0 %v1942
        %1974 = vmatprep.subr.mxu0 0.0
        %1975 = vmatpush1.msra.mxu0 %v1941
        %1976 = vmatprep.subr.mxu0 0.0
        %1977 = vmatpush1.msra.mxu0 %v1940
        %1978 = vmatprep.subr.mxu0 0.0
        %1979 = vmatpush1.msra.mxu0 %v1939
        %1980 = vmatprep.subr.mxu0 0.0
        %1981 = vmatpush1.msra.mxu0 %v1938
        %1982 = vmatprep.subr.mxu0 0.0
        %1983 = vmatpush1.msra.mxu0 %v1937
        %1984 = vmatprep.subr.mxu0 0.0
        %1985 = vmatpush1.msra.mxu0 %v1936
        %1986 = vmatprep.subr.mxu0 0.0
        %1987 = vmatpush1.msra.mxu0 %v1935
        %1988 = vmatprep.subr.mxu0 0.0
        %1989 = vmatpush2.msra.mxu0 0.0
        %1990 = vmatprep.subr.mxu0 0.0
        %1991 = vmatpush2.msra.mxu0 0.0
        %1992 = vmatprep.subr.mxu0 0.0
        %1993 = vmatpush2.msra.mxu0 0.0
        %1994 = vmatprep.subr.mxu0 0.0
        %1995 = vmatpush2.msra.mxu0 0.0
        %1996 = vmatprep.subr.mxu0 0.0
        %1997 = vmatpush2.msra.mxu0 0.0
        %1998 = vmatprep.subr.mxu0 0.0
        %1999 = vmatpush2.msra.mxu0 0.0
        %2000 = vmatprep.subr.mxu0 0.0
        %2001 = vmatpush2.msra.mxu0 0.0
        %2002 = vmatprep.subr.mxu0 0.0
        %2003 = vmatpush2.msra.mxu0 0.0
        %2004 = vmatprep.subr.mxu0 0.0
        %2005 = vmatpush2.msra.mxu0 0.0
        %2006 = vmatprep.subr.mxu0 0.0
        %2007 = vmatpush2.msra.mxu0 0.0
        %2008 = vmatprep.subr.mxu0 0.0
        %2009 = vmatpush2.msra.mxu0 0.0
        %2010 = vmatprep.subr.mxu0 0.0
        %2011 = vmatpush2.msra.mxu0 0.0
        %2012 = vmatprep.subr.mxu0 0.0
        %2013 = vmatpush2.msra.mxu0 0.0
        %2014 = vmatprep.subr.mxu0 0.0
        %2015 = vmatpush2.msra.mxu0 0.0
        %2016 = vmatprep.subr.mxu0 0.0
        %2017 = vmatpush2.msra.mxu0 0.0
        %2018 = vmatprep.subr.mxu0 0.0
        %2019 = vmatpush2.msra.mxu0 0.0
        %2020 = vmatprep.mubr.f32.mxu0 0.0
        %2021 = vmatmul.mubr.f32.gmra.mxu0 %v1903
        %v2022 = vpop.f32.mrf.mxu0
        %v2023 = vadd.f32 %v1955, %v2022
        %v2024 = vpop.f32.mrf.mxu0
        %2025 = vmatprep.mubr.f32.mxu0 0.0
        %2026 = vmatmul.mubr.f32.gmra.mxu0 %v1904
        %v2027 = vpop.f32.mrf.mxu0
        %v2028 = vadd.f32 %v1955, %v2027
        %v2029 = vpop.f32.mrf.mxu0
        %2030 = vmatprep.mubr.f32.mxu0 0.0
        %2031 = vmatmul.mubr.f32.gmra.mxu0 %v1905
        %v2032 = vpop.f32.mrf.mxu0
        %v2033 = vadd.f32 %v1955, %v2032
        %v2034 = vpop.f32.mrf.mxu0
        %2035 = vmatprep.mubr.f32.mxu0 0.0
        %2036 = vmatmul.mubr.f32.gmra.mxu0 %v1906
        %v2037 = vpop.f32.mrf.mxu0
        %v2038 = vadd.f32 %v1955, %v2037
        %v2039 = vpop.f32.mrf.mxu0
        %2040 = vmatprep.mubr.f32.mxu0 0.0
        %2041 = vmatmul.mubr.f32.gmra.mxu0 %v1907
        %v2042 = vpop.f32.mrf.mxu0
        %v2043 = vadd.f32 %v1955, %v2042
        %v2044 = vpop.f32.mrf.mxu0
        %2045 = vmatprep.mubr.f32.mxu0 0.0
        %2046 = vmatmul.mubr.f32.gmra.mxu0 %v1908
        %v2047 = vpop.f32.mrf.mxu0
        %v2048 = vadd.f32 %v1955, %v2047
        %v2049 = vpop.f32.mrf.mxu0
        %2050 = vmatprep.mubr.f32.mxu0 0.0
        %2051 = vmatmul.mubr.f32.gmra.mxu0 %v1909
        %v2052 = vpop.f32.mrf.mxu0
        %v2053 = vadd.f32 %v1955, %v2052
        %v2054 = vpop.f32.mrf.mxu0
        %2055 = vmatprep.mubr.f32.mxu0 0.0
        %2056 = vmatmul.mubr.f32.gmra.mxu0 %v1910
        %v2057 = vpop.f32.mrf.mxu0
        %v2058 = vadd.f32 %v1955, %v2057
        %v2059 = vpop.f32.mrf.mxu0
        %2060 = vmatprep.mubr.f32.mxu0 0.0
        %2061 = vmatmul.mubr.f32.gmra.mxu0 %v1911
        %v2062 = vpop.f32.mrf.mxu0
        %v2063 = vadd.f32 %v1955, %v2062
        %v2064 = vpop.f32.mrf.mxu0
        %2065 = vmatprep.mubr.f32.mxu0 0.0
        %2066 = vmatmul.mubr.f32.gmra.mxu0 %v1912
        %v2067 = vpop.f32.mrf.mxu0
        %v2068 = vadd.f32 %v1955, %v2067
        %v2069 = vpop.f32.mrf.mxu0
        %2070 = vmatprep.mubr.f32.mxu0 0.0
        %2071 = vmatmul.mubr.f32.gmra.mxu0 %v1913
        %v2072 = vpop.f32.mrf.mxu0
        %v2073 = vadd.f32 %v1955, %v2072
        %v2074 = vpop.f32.mrf.mxu0
        %2075 = vmatprep.mubr.f32.mxu0 0.0
        %2076 = vmatmul.mubr.f32.gmra.mxu0 %v1914
        %v2077 = vpop.f32.mrf.mxu0
        %v2078 = vadd.f32 %v1955, %v2077
        %v2079 = vpop.f32.mrf.mxu0
        %2080 = vmatprep.mubr.f32.mxu0 0.0
        %2081 = vmatmul.mubr.f32.gmra.mxu0 %v1915
        %v2082 = vpop.f32.mrf.mxu0
        %v2083 = vadd.f32 %v1955, %v2082
        %v2084 = vpop.f32.mrf.mxu0
        %2085 = vmatprep.mubr.f32.mxu0 0.0
        %2086 = vmatmul.mubr.f32.gmra.mxu0 %v1916
        %v2087 = vpop.f32.mrf.mxu0
        %v2088 = vadd.f32 %v1955, %v2087
        %v2089 = vpop.f32.mrf.mxu0
        %2090 = vmatprep.mubr.f32.mxu0 0.0
        %2091 = vmatmul.mubr.f32.gmra.mxu0 %v1917
        %v2092 = vpop.f32.mrf.mxu0
        %v2093 = vadd.f32 %v1955, %v2092
        %v2094 = vpop.f32.mrf.mxu0
        %2095 = vmatprep.mubr.f32.mxu0 0.0
        %2096 = vmatmul.mubr.f32.gmra.mxu0 %v1918
        %v2097 = vpop.f32.mrf.mxu0
        %v2098 = vadd.f32 %v1955, %v2097
        %v2099 = vpop.f32.mrf.mxu0
        %2100 = vmatprep.mubr.f32.mxu0 0.0
        %2101 = vmatmul.mubr.f32.gmra.mxu0 %v1919
        %v2102 = vpop.f32.mrf.mxu0
        %v2103 = vadd.f32 %v1955, %v2102
        %v2104 = vpop.f32.mrf.mxu0
        %2105 = vmatprep.mubr.f32.mxu0 0.0
        %2106 = vmatmul.mubr.f32.gmra.mxu0 %v1920
        %v2107 = vpop.f32.mrf.mxu0
        %v2108 = vadd.f32 %v1955, %v2107
        %v2109 = vpop.f32.mrf.mxu0
        %2110 = vmatprep.mubr.f32.mxu0 0.0
        %2111 = vmatmul.mubr.f32.gmra.mxu0 %v1921
        %v2112 = vpop.f32.mrf.mxu0
        %v2113 = vadd.f32 %v1955, %v2112
        %v2114 = vpop.f32.mrf.mxu0
        %2115 = vmatprep.mubr.f32.mxu0 0.0
        %2116 = vmatmul.mubr.f32.gmra.mxu0 %v1922
        %v2117 = vpop.f32.mrf.mxu0
        %v2118 = vadd.f32 %v1955, %v2117
        %v2119 = vpop.f32.mrf.mxu0
        %2120 = vmatprep.mubr.f32.mxu0 0.0
        %2121 = vmatmul.mubr.f32.gmra.mxu0 %v1923
        %v2122 = vpop.f32.mrf.mxu0
        %v2123 = vadd.f32 %v1955, %v2122
        %v2124 = vpop.f32.mrf.mxu0
        %2125 = vmatprep.mubr.f32.mxu0 0.0
        %2126 = vmatmul.mubr.f32.gmra.mxu0 %v1924
        %v2127 = vpop.f32.mrf.mxu0
        %v2128 = vadd.f32 %v1955, %v2127
        %v2129 = vpop.f32.mrf.mxu0
        %2130 = vmatprep.mubr.f32.mxu0 0.0
        %2131 = vmatmul.mubr.f32.gmra.mxu0 %v1925
        %v2132 = vpop.f32.mrf.mxu0
        %v2133 = vadd.f32 %v1955, %v2132
        %v2134 = vpop.f32.mrf.mxu0
        %2135 = vmatprep.mubr.f32.mxu0 0.0
        %2136 = vmatmul.mubr.f32.gmra.mxu0 %v1926
        %v2137 = vpop.f32.mrf.mxu0
        %v2138 = vadd.f32 %v1955, %v2137
        %v2139 = vpop.f32.mrf.mxu0
        %2140 = vmatprep.mubr.f32.mxu0 0.0
        %2141 = vmatmul.mubr.f32.gmra.mxu0 %v1927
        %v2142 = vpop.f32.mrf.mxu0
        %v2143 = vadd.f32 %v1955, %v2142
        %v2144 = vpop.f32.mrf.mxu0
        %2145 = vmatprep.mubr.f32.mxu0 0.0
        %2146 = vmatmul.mubr.f32.gmra.mxu0 %v1928
        %v2147 = vpop.f32.mrf.mxu0
        %v2148 = vadd.f32 %v1955, %v2147
        %v2149 = vpop.f32.mrf.mxu0
        %2150 = vmatprep.mubr.f32.mxu0 0.0
        %2151 = vmatmul.mubr.f32.gmra.mxu0 %v1929
        %v2152 = vpop.f32.mrf.mxu0
        %v2153 = vadd.f32 %v1955, %v2152
        %v2154 = vpop.f32.mrf.mxu0
        %2155 = vmatprep.mubr.f32.mxu0 0.0
        %2156 = vmatmul.mubr.f32.gmra.mxu0 %v1930
        %v2157 = vpop.f32.mrf.mxu0
        %v2158 = vadd.f32 %v1955, %v2157
        %v2159 = vpop.f32.mrf.mxu0
        %2160 = vmatprep.mubr.f32.mxu0 0.0
        %2161 = vmatmul.mubr.f32.gmra.mxu0 %v1931
        %v2162 = vpop.f32.mrf.mxu0
        %v2163 = vadd.f32 %v1955, %v2162
        %v2164 = vpop.f32.mrf.mxu0
        %2165 = vmatprep.mubr.f32.mxu0 0.0
        %2166 = vmatmul.mubr.f32.gmra.mxu0 %v1932
        %v2167 = vpop.f32.mrf.mxu0
        %v2168 = vadd.f32 %v1955, %v2167
        %v2169 = vpop.f32.mrf.mxu0
        %2170 = vmatprep.mubr.f32.mxu0 0.0
        %2171 = vmatmul.mubr.f32.gmra.mxu0 %v1933
        %v2172 = vpop.f32.mrf.mxu0
        %v2173 = vadd.f32 %v1955, %v2172
        %v2174 = vpop.f32.mrf.mxu0
        %2175 = vmatprep.mubr.f32.mxu0 0.0
        %2176 = vmatmul.mubr.f32.gmra.mxu0 %v1934
        %v2177 = vpop.f32.mrf.mxu0
        %v2178 = vadd.f32 %v1955, %v2177
        %v2179 = vpop.f32.mrf.mxu0
        %2180 = vdwg.mxu0
        %2181 = vst [vmem:[%s507] sm:$0xff] %v2023
        %2182 = vst [vmem:[%s507 + $0x8] sm:$0xff] %v2028
        %2183 = vst [vmem:[%s507 + $0x10] sm:$0xff] %v2033
        %2184 = vst [vmem:[%s507 + $0x18] sm:$0xff] %v2038
        %2185 = vst [vmem:[%s507 + $0x20] sm:$0xff] %v2043
        %2186 = vst [vmem:[%s507 + $0x28] sm:$0xff] %v2048
        %2187 = vst [vmem:[%s507 + $0x30] sm:$0xff] %v2053
        %2188 = vst [vmem:[%s507 + $0x38] sm:$0xff] %v2058
        %2189 = vst [vmem:[%s507 + $0x40] sm:$0xff] %v2063
        %2190 = vst [vmem:[%s507 + $0x48] sm:$0xff] %v2068
        %2191 = vst [vmem:[%s507 + $0x50] sm:$0xff] %v2073
        %2192 = vst [vmem:[%s507 + $0x58] sm:$0xff] %v2078
        %2193 = vst [vmem:[%s507 + $0x60] sm:$0xff] %v2083
        %2194 = vst [vmem:[%s507 + $0x68] sm:$0xff] %v2088
        %2195 = vst [vmem:[%s507 + $0x70] sm:$0xff] %v2093
        %2196 = vst [vmem:[%s507 + $0x78] sm:$0xff] %v2098
        %2197 = vst [vmem:[%s507 + $0x80] sm:$0xff] %v2103
        %2198 = vst [vmem:[%s507 + $0x88] sm:$0xff] %v2108
        %2199 = vst [vmem:[%s507 + $0x90] sm:$0xff] %v2113
        %2200 = vst [vmem:[%s507 + $0x98] sm:$0xff] %v2118
        %2201 = vst [vmem:[%s507 + $0xa0] sm:$0xff] %v2123
        %2202 = vst [vmem:[%s507 + $0xa8] sm:$0xff] %v2128
        %2203 = vst [vmem:[%s507 + $0xb0] sm:$0xff] %v2133
        %2204 = vst [vmem:[%s507 + $0xb8] sm:$0xff] %v2138
        %2205 = vst [vmem:[%s507 + $0xc0] sm:$0xff] %v2143
        %2206 = vst [vmem:[%s507 + $0xc8] sm:$0xff] %v2148
        %2207 = vst [vmem:[%s507 + $0xd0] sm:$0xff] %v2153
        %2208 = vst [vmem:[%s507 + $0xd8] sm:$0xff] %v2158
        %2209 = vst [vmem:[%s507 + $0xe0] sm:$0xff] %v2163
        %2210 = vst [vmem:[%s507 + $0xe8] sm:$0xff] %v2168
        %2211 = vst [vmem:[%s507 + $0xf0] sm:$0xff] %v2173
        %2212 = vst [vmem:[%s507 + $0xf8] sm:$0xff] %v2178
        %s2213 = sand.u32 %s271, 1
        %s2214 = scalar_lea.sflag [#allocation6], %s2213
        %s2215 = sand.u32 %s271, 1
        %s2216 = smul.addr %s2215, 256
        %s2217 = scalar_lea.vmem [#allocation20], %s2216
        // Predicated region
        $region101: #{tpu_custom_call.1} parent=59 // pred_check
          %p2218 = pneg %p281
        $region102: #{tpu_custom_call.1} parent=59 // pred_check_branch
          %2220 = sbr.rel (%p2218) target = $region104
        $region103: #{tpu_custom_call.1} parent=59 // pred_region
          %s2221 = smul.u32 32, %s37
          %s2223 = ssub.s32 4096, 4096
          %2224 = vsyncadd %s2214, %s2223
          %s2225 = smul.addr %s36, 64
          %s2226 = sadd.s32 %s2221, %s2225
          %s2227 = smul.addr %s2226, 128
          %s2228 = scalar_lea.hbm %s10, %s2227
          %s2229 = sshll.u32 %s2217, 4
          %s2230 = int_to_ptr.vmem [resolvable:$true] %s2229
          %2235 = dma.vmem_to_hbm [thread:$0]  %s2230, 4096, %s2228, %s2214, 128, 128, 8
        $region104: #{tpu_custom_call.1} parent=59 // pred_fallthru
          _
      $region60: #{tpu_custom_call.1} parent=5 // pred_fallthru
        _
      %p2236 = scmp.le.s32.totalorder 2, %s27
      // Predicated region
      $region105: #{tpu_custom_call.1} parent=5 // pred_check
        %p2237 = pneg %p2236
      $region106: #{tpu_custom_call.1} parent=5 // pred_check_branch
        %2239 = sbr.rel (%p2237) target = $region108
      $region107: #{tpu_custom_call.1} parent=5 // pred_region
        %s2240 = ssub.s32 %s27, 2
        // Predicated region
        $region109: #{tpu_custom_call.1} parent=107 // pred_check
          %p2241 = pneg %p287
        $region110: #{tpu_custom_call.1} parent=107 // pred_check_branch
          %2243 = sbr.rel (%p2241) target = $region112
        $region111: #{tpu_custom_call.1} parent=107 // pred_region
          %s2244 = sand.u32 %s272, 1
          %s2245 = scalar_lea.sflag [#allocation6], %s2244
          %s2246 = sand.u32 %s272, 1
          %s2247 = smul.addr %s2246, 256
          %s2248 = scalar_lea.vmem [#allocation20], %s2247
          %2249 = dma.done %s2245, 4096
        $region112: #{tpu_custom_call.1} parent=107 // pred_fallthru
          _
      $region108: #{tpu_custom_call.1} parent=5 // pred_fallthru
        _
    $region6: #{tpu_custom_call.1} parent=1 // loop_footer
      %s31 = sadd.s32 1, %s27
    $region7: #{tpu_custom_call.1} parent=1 // loop_footer_branch
      %26 = sbr.rel target = $region3
    $region8: #{tpu_custom_call.1} parent=1 // loop_exit
      _
    %2250 = vsyncpa [#allocation5], 1
    %s2251 = scalar_lea.sflag [#allocation5], 1
    %2252 = vsyncpa %s2251, 1
    %2253 = vsyncpa [#allocation10], 1
    %s2254 = scalar_lea.sflag [#allocation10], 1
    %2255 = vsyncpa %s2254, 1
    %2256 = vsyncpa [#allocation13], 1
    %2257 = vsyncpa [#allocation16], 1
    %2258 = vsyncpa [#allocation19], 1
    %2259 = vsyncpa [#allocation6], 1
    %s2260 = scalar_lea.sflag [#allocation6], 1
    %2261 = vsyncpa %s2260, 1
    %2262 = vsyncpa [#allocation7], 1
    %s2263 = scalar_lea.sflag [#allocation7], 1
    %2264 = vsyncpa %s2263, 1

</llo_original>
